<compile_context>
chip_gen: v5e
topology: v5e:2x2
jax: 0.10.0
libtpu: 0.0.40
codegen_flags: <defaults>
</compile_context>

<pallas_src>
import functools

import numpy as np

import jax
import jax.numpy as jnp
from jax.experimental import pallas as pl
from jax.experimental.pallas import tpu as pltpu


LANE = 128  # lane-dense padding for the output / conv1-K dims


def _round_up(x, m):
    return (x + m - 1) // m * m


def conv2d_size_out(size, kernel_size=5, stride=2):
    return (size - (kernel_size - 1) - 1) // stride + 1


# ---------------------------------------------------------------------------
# In-kernel helper: row-major flatten of a static window using slices + one
# lane concatenation (no reshapes -- keeps Mosaic lowering on the safe path).
# ---------------------------------------------------------------------------
def _flat_window(y2d, r0, nrows, c0, ncols):
    parts = [y2d[r0 + i:r0 + i + 1, c0:c0 + ncols] for i in range(nrows)]
    return parts[0] if nrows == 1 else jnp.concatenate(parts, axis=1)


# ---------------------------------------------------------------------------
# Fused Pallas kernel: conv1 + conv2 + conv3 + folded head, one batch element
# per grid step (grid is parallel over the batch).
# ---------------------------------------------------------------------------
def _make_dqn_kernel(meta):
    ho1, wo1 = meta["ho1"], meta["wo1"]
    ho2, wo2 = meta["ho2"], meta["wo2"]
    ho3, wo3 = meta["ho3"], meta["wo3"]
    p3 = meta["p3"]
    C1, C2, C3 = 32, 64, 64
    f32, bf16 = jnp.float32, jnp.bfloat16

    def kernel(cols1_ref, w1_ref, b1_ref, w2_ref, b2_ref, w3_ref, b3_ref,
               wh_ref, bh_ref, out_ref):
        # ---- conv1: one K = 8*8*frame matmul over pre-built patches --------
        y1 = jnp.dot(cols1_ref[0], w1_ref[...], preferred_element_type=f32)
        y1 = jnp.maximum(y1 + b1_ref[...], 0.0)            # [wo1*ho1, 32], rows (ow, oh)

        # regroup to a spatial 2-D layout: y1_2d[oh, ow*32 + c]
        y1_2d = jnp.concatenate(
            [y1[ow * ho1:(ow + 1) * ho1, :] for ow in range(wo1)], axis=1)   # [ho1, wo1*32]

        # ---- conv2 (4x4, stride 2): static-slice im2col + ONE K=512 matmul -
        rows2 = [_flat_window(y1_2d, 2 * h, 4, C1 * 2 * w, C1 * 4)
                 for w in range(wo2) for h in range(ho2)]                    # rows (w, h)
        cols2 = jnp.concatenate(rows2, axis=0).astype(bf16)                  # [wo2*ho2, 512]
        y2 = jnp.dot(cols2, w2_ref[...], preferred_element_type=f32)
        y2 = jnp.maximum(y2 + b2_ref[...], 0.0)                              # [wo2*ho2, 64]

        y2_2d = jnp.concatenate(
            [y2[w * ho2:(w + 1) * ho2, :] for w in range(wo2)], axis=1)      # [ho2, wo2*64]

        # ---- conv3 (3x3, stride 1): static-slice im2col + ONE K=576 matmul -
        rows3 = [_flat_window(y2_2d, h, 3, C2 * w, C2 * 3)
                 for h in range(ho3) for w in range(wo3)]                    # rows p = h*wo3+w
        cols3 = jnp.concatenate(rows3, axis=0).astype(bf16)                  # [p3, 576]
        y3 = jnp.dot(cols3, w3_ref[...], preferred_element_type=f32)
        y3 = jnp.maximum(y3 + b3_ref[...], 0.0)                              # [p3, 64]

        # ---- fused head (head_output . head_inter, no activation between);
        #      the PyTorch NCHW flatten order is baked into wh's rows offline.
        hin = _flat_window(y3, 0, p3, 0, C3)                                 # [1, p3*64]
        hin = jnp.concatenate([hin, jnp.zeros((7, p3 * C3), f32)], axis=0)   # pad M to 8
        outv = jnp.dot(hin.astype(bf16), wh_ref[...], preferred_element_type=f32)
        out_ref[0] = (outv + bh_ref[...]).astype(out_ref.dtype)              # full (8,128) store

    return kernel


# ---------------------------------------------------------------------------
# Parameters (deterministic synthetic init) and offline fused-parameter prep
# ---------------------------------------------------------------------------
def init_dqn_params(key, input_shape, outputs):
    frame, width, height = input_shape
    convw = conv2d_size_out(conv2d_size_out(conv2d_size_out(width, 8, 4), 4, 2), 3, 1)
    convh = conv2d_size_out(conv2d_size_out(conv2d_size_out(height, 8, 4), 4, 2), 3, 1)
    linear_input_size = convw * convh * 64

    keys = jax.random.split(key, 10)

    def w(k, shape, fan_in):
        return (jax.random.normal(k, shape, jnp.float32) / jnp.sqrt(fan_in)).astype(jnp.float32)

    params = {
        # conv weights stored flattened as [kh*kw*Cin, Cout] (row order kh, kw, Cin)
        "w1": w(keys[0], (8 * 8 * frame, 32), 8 * 8 * frame),
        "b1": w(keys[1], (32,), 8 * 8 * frame),
        "w2": w(keys[2], (4 * 4 * 32, 64), 4 * 4 * 32),
        "b2": w(keys[3], (64,), 4 * 4 * 32),
        "w3": w(keys[4], (3 * 3 * 64, 64), 3 * 3 * 64),
        "b3": w(keys[5], (64,), 3 * 3 * 64),
        # linear weights stored as [in, out]
        "wi": w(keys[6], (linear_input_size, 512), linear_input_size),
        "bi": w(keys[7], (512,), linear_input_size),
        "wo": w(keys[8], (512, outputs), 512),
        "bo": w(keys[9], (outputs,), 512),
    }
    return params, linear_input_size


def bf16_round_weights(params):
    """Round weight matrices to bf16 (the kernel's storage/compute dtype).

    The reference uses these same rounded weights so the kernel/reference delta
    only measures the kernel's bf16 activation casts (f32 accumulation kept)."""
    q = dict(params)
    for k in ("w1", "w2", "w3", "wi", "wo"):
        q[k] = jnp.asarray(params[k], jnp.bfloat16).astype(jnp.float32)
    return q


def prepare_fused(params, input_shape, outputs, batch):
    """Pack padded, VMEM-friendly bf16 operands for the single fused kernel."""
    frame, width, height = input_shape
    ho1, wo1 = conv2d_size_out(width, 8, 4), conv2d_size_out(height, 8, 4)
    ho2, wo2 = conv2d_size_out(ho1, 4, 2), conv2d_size_out(wo1, 4, 2)
    ho3, wo3 = conv2d_size_out(ho2, 3, 1), conv2d_size_out(wo2, 3, 1)
    p3 = ho3 * wo3
    k1 = 8 * 8 * frame
    k1p = _round_up(k1, LANE)
    np_out = _round_up(outputs, LANE)

    # conv1 weight: pad the (kh, kw, cin) contraction rows to a lane multiple.
    w1 = np.zeros((k1p, 32), np.float32)
    w1[:k1, :] = np.asarray(params["w1"], np.float32)
    w2 = np.asarray(params["w2"], np.float32)          # [512, 64], rows (kh, kw, cin)
    w3 = np.asarray(params["w3"], np.float32)          # [576, 64]

    # Fold head_inter . head_output into one affine map; reorder rows from the
    # PyTorch NCHW flatten order (c*p3 + p) to the kernel's (p*64 + c) order and
    # pad the output dim to a full 128-lane store.
    wi = np.asarray(params["wi"], np.float32)
    wo = np.asarray(params["wo"], np.float32)
    bi = np.asarray(params["bi"], np.float32)
    bo = np.asarray(params["bo"], np.float32)
    w_fold = wi @ wo                                    # [64*p3, outputs]
    b_fold = bi @ wo + bo
    w_fold = w_fold.reshape(64, p3, outputs).transpose(1, 0, 2).reshape(p3 * 64, outputs)
    whp = np.zeros((p3 * 64, np_out), np.float32)
    whp[:, :outputs] = w_fold
    bhp = np.zeros((1, np_out), np.float32)
    bhp[0, :outputs] = b_fold

    bf16 = jnp.bfloat16
    fused = {
        "w1": jnp.asarray(w1, bf16),
        "b1": jnp.asarray(params["b1"], jnp.float32).reshape(1, 32),
        "w2": jnp.asarray(w2, bf16),
        "b2": jnp.asarray(params["b2"], jnp.float32).reshape(1, 64),
        "w3": jnp.asarray(w3, bf16),
        "b3": jnp.asarray(params["b3"], jnp.float32).reshape(1, 64),
        "wh": jnp.asarray(whp, bf16),
        "bh": jnp.asarray(bhp, jnp.float32),
    }
    meta = {"batch": batch, "outputs": outputs, "frame": frame,
            "ho1": ho1, "wo1": wo1, "ho2": ho2, "wo2": wo2,
            "ho3": ho3, "wo3": wo3, "p3": p3,
            "k1": k1, "k1p": k1p, "np_out": np_out}
    return fused, meta


# ---------------------------------------------------------------------------
# Forward pass: one fused wrapper-side conv1 patch extraction + one pallas_call
# ---------------------------------------------------------------------------
def _conv1_patches(x_nchw, meta):
    """[B, frame, H, W] -> bf16 [B, wo1*ho1, k1p] conv1 im2col patches.

    Row order is (ow, oh) and column order (kh, kw, cin), matching the packed
    conv1 weight and the in-kernel spatial regrouping."""
    b, frame = x_nchw.shape[0], x_nchw.shape[1]
    ho1, wo1 = meta["ho1"], meta["wo1"]
    k1, k1p = meta["k1"], meta["k1p"]
    x = jnp.transpose(x_nchw, (0, 2, 3, 1))                       # NHWC
    slabs = [x[:, i:i + 4 * ho1:4, j:j + 4 * wo1:4, :]
             for i in range(8) for j in range(8)]                 # each [B, ho1, wo1, C]
    cols = jnp.stack(slabs, axis=3)                               # [B, ho1, wo1, 64, C]
    cols = jnp.transpose(cols, (0, 2, 1, 3, 4))                   # [B, wo1, ho1, 64, C]
    cols = cols.reshape(b, wo1 * ho1, 64 * frame)
    if k1p > k1:
        cols = jnp.pad(cols, ((0, 0), (0, 0), (0, k1p - k1)))
    return cols.astype(jnp.bfloat16)


def dqn_forward(fused, x_nchw, *, meta):
    """x_nchw: [B, frame, H, W] float32 -> [B, outputs]."""
    b, n_out = meta["batch"], meta["outputs"]
    m1 = meta["ho1"] * meta["wo1"]
    k1p, np_out = meta["k1p"], meta["np_out"]

    cols1 = _conv1_patches(x_nchw, meta)

    operands = (cols1, fused["w1"], fused["b1"], fused["w2"], fused["b2"],
                fused["w3"], fused["b3"], fused["wh"], fused["bh"])

    def _const_spec(arr):
        nd = arr.ndim
        return pl.BlockSpec(arr.shape, lambda i, _nd=nd: (0,) * _nd)

    in_specs = [pl.BlockSpec((1, m1, k1p), lambda i: (i, 0, 0))]
    in_specs += [_const_spec(op) for op in operands[1:]]
    out_specs = pl.BlockSpec((1, 8, np_out), lambda i: (i, 0, 0))

    m2 = meta["ho2"] * meta["wo2"]
    flops = 2 * b * (m1 * k1p * 32 + m2 * 512 * 64
                     + meta["p3"] * 576 * 64 + 8 * meta["p3"] * 64 * np_out)
    bytes_accessed = (sum(int(op.size) * op.dtype.itemsize for op in operands)
                      + b * 8 * np_out * 4)

    out_p = pl.pallas_call(
        _make_dqn_kernel(meta),
        grid=(b,),
        out_shape=jax.ShapeDtypeStruct((b, 8, np_out), jnp.float32),
        in_specs=in_specs,
        out_specs=out_specs,
        compiler_params=pltpu.CompilerParams(dimension_semantics=("parallel",)),
        cost_estimate=pl.CostEstimate(flops=int(flops), transcendentals=0,
                                      bytes_accessed=int(bytes_accessed)),
    )(*operands)

    return out_p[:, 0, :n_out]


# ---------------------------------------------------------------------------
# Pure-JAX reference (unfused, f32 math) for correctness checking
# ---------------------------------------------------------------------------
def _ref_conv(x_nchw, w_flat, bias, kh, kw, stride, cin, cout):
    w_oihw = jnp.transpose(w_flat.reshape(kh, kw, cin, cout), (3, 2, 0, 1))
    y = jax.lax.conv_general_dilated(
        x_nchw, w_oihw, (stride, stride), "VALID",
        dimension_numbers=("NCHW", "OIHW", "NCHW"))
    return jnp.maximum(y + bias[None, :, None, None], 0.0)


def dqn_forward_ref(params, x_nchw, frame):
    b = x_nchw.shape[0]
    x = _ref_conv(x_nchw, params["w1"], params["b1"], 8, 8, 4, frame, 32)
    x = _ref_conv(x, params["w2"], params["b2"], 4, 4, 2, 32, 64)
    x = _ref_conv(x, params["w3"], params["b3"], 3, 3, 1, 64, 64)
    x = x.reshape(b, -1)
    h = x @ params["wi"] + params["bi"]
    return h @ params["wo"] + params["bo"]


if __name__ == "__main__":
    B = 2
    input_shape = (4, 36, 36)   # (frame, width, height); conv stack needs >= 36 spatial
    outputs = 6

    key = jax.random.PRNGKey(0)
    pkey, xkey = jax.random.split(key)
    params, _ = init_dqn_params(pkey, input_shape, outputs)

    # The kernel stores / multiplies weights in bf16 (f32 accumulation); use the
    # same bf16-rounded weights in the f32 reference so the comparison isolates
    # the kernel's own error (bf16 activation casts + accumulation order).
    params_q = bf16_round_weights(params)
    fused, meta = prepare_fused(params_q, input_shape, outputs, B)

    x = jax.random.normal(xkey, (B,) + input_shape, jnp.float32)

    fwd = jax.jit(functools.partial(dqn_forward, meta=meta))
    out = jax.block_until_ready(fwd(fused, x))
    ref = jax.block_until_ready(dqn_forward_ref(params_q, x, input_shape[0]))

    assert out.shape == (B, outputs), out.shape
    max_err = float(jnp.max(jnp.abs(out - ref)))
    assert jnp.allclose(out, ref, atol=1e-2, rtol=1e-2), f"max abs err {max_err}"

    print("KERNEL_OK")
</pallas_src>

<mosaic_0001>
module attributes {stable_mosaic.version = 11 : i64} {
  func.func @kernel(%arg0: i32, %arg1: memref<1x64x256xbf16, #tpu.memory_space<vmem>>, %arg2: memref<256x32xbf16, #tpu.memory_space<vmem>>, %arg3: memref<1x32xf32, #tpu.memory_space<vmem>>, %arg4: memref<512x64xbf16, #tpu.memory_space<vmem>>, %arg5: memref<1x64xf32, #tpu.memory_space<vmem>>, %arg6: memref<576x64xbf16, #tpu.memory_space<vmem>>, %arg7: memref<1x64xf32, #tpu.memory_space<vmem>>, %arg8: memref<64x128xbf16, #tpu.memory_space<vmem>>, %arg9: memref<1x128xf32, #tpu.memory_space<vmem>>, %arg10: memref<1x8x128xf32, #tpu.memory_space<vmem>>) attributes {dimension_semantics = [#tpu.dimension_semantics<parallel>], iteration_bounds = array<i64: 2>, scalar_prefetch = 0 : i64, scratch_operands = 0 : i64, tpu.core_type = #tpu.core_type<tc>, window_params = [{transform_indices = @transform_0, window_bounds = array<i64: 1, 64, 256>}, {pipeline_mode = #tpu.pipeline_mode<synchronous>, transform_indices = @transform_1, window_bounds = array<i64: 256, 32>}, {pipeline_mode = #tpu.pipeline_mode<synchronous>, transform_indices = @transform_2, window_bounds = array<i64: 1, 32>}, {pipeline_mode = #tpu.pipeline_mode<synchronous>, transform_indices = @transform_3, window_bounds = array<i64: 512, 64>}, {pipeline_mode = #tpu.pipeline_mode<synchronous>, transform_indices = @transform_4, window_bounds = array<i64: 1, 64>}, {pipeline_mode = #tpu.pipeline_mode<synchronous>, transform_indices = @transform_5, window_bounds = array<i64: 576, 64>}, {pipeline_mode = #tpu.pipeline_mode<synchronous>, transform_indices = @transform_6, window_bounds = array<i64: 1, 64>}, {pipeline_mode = #tpu.pipeline_mode<synchronous>, transform_indices = @transform_7, window_bounds = array<i64: 64, 128>}, {pipeline_mode = #tpu.pipeline_mode<synchronous>, transform_indices = @transform_8, window_bounds = array<i64: 1, 128>}, {transform_indices = @transform_9, window_bounds = array<i64: 1, 8, 128>}]} {
    %c0 = arith.constant 0 : index
    %c0_0 = arith.constant 0 : index
    %c0_1 = arith.constant 0 : index
    %0 = vector.load %arg1[%c0, %c0_0, %c0_1] : memref<1x64x256xbf16, #tpu.memory_space<vmem>>, vector<1x64x256xbf16>
    %1 = vector.shape_cast %0 : vector<1x64x256xbf16> to vector<64x256xbf16>
    %c0_2 = arith.constant 0 : index
    %c0_3 = arith.constant 0 : index
    %2 = vector.load %arg2[%c0_2, %c0_3] : memref<256x32xbf16, #tpu.memory_space<vmem>>, vector<256x32xbf16>
    %cst = arith.constant dense<0.000000e+00> : vector<64x32xf32>
    %3 = tpu.matmul %1, %2, %cst {dimension_numbers = #tpu.dot_dimension_numbers<[1], [0], [0], [1], [0, 0, 1, 1], [], []>} : vector<64x256xbf16>, vector<256x32xbf16>, vector<64x32xf32> -> vector<64x32xf32>
    %c0_4 = arith.constant 0 : index
    %c0_5 = arith.constant 0 : index
    %4 = vector.load %arg3[%c0_4, %c0_5] : memref<1x32xf32, #tpu.memory_space<vmem>>, vector<1x32xf32>
    %5 = vector.broadcast %4 : vector<1x32xf32> to vector<64x32xf32>
    %6 = arith.addf %3, %5 : vector<64x32xf32>
    %cst_6 = arith.constant 0.000000e+00 : f32
    %7 = vector.broadcast %cst_6 : f32 to vector<64x32xf32>
    %8 = arith.maximumf %6, %7 : vector<64x32xf32>
    %9 = vector.extract_strided_slice %8 {offsets = [0, 0], sizes = [8, 32], strides = [1, 1]} : vector<64x32xf32> to vector<8x32xf32>
    %10 = vector.extract_strided_slice %8 {offsets = [8, 0], sizes = [8, 32], strides = [1, 1]} : vector<64x32xf32> to vector<8x32xf32>
    %11 = vector.extract_strided_slice %8 {offsets = [16, 0], sizes = [8, 32], strides = [1, 1]} : vector<64x32xf32> to vector<8x32xf32>
    %12 = vector.extract_strided_slice %8 {offsets = [24, 0], sizes = [8, 32], strides = [1, 1]} : vector<64x32xf32> to vector<8x32xf32>
    %13 = vector.extract_strided_slice %8 {offsets = [32, 0], sizes = [8, 32], strides = [1, 1]} : vector<64x32xf32> to vector<8x32xf32>
    %14 = vector.extract_strided_slice %8 {offsets = [40, 0], sizes = [8, 32], strides = [1, 1]} : vector<64x32xf32> to vector<8x32xf32>
    %15 = vector.extract_strided_slice %8 {offsets = [48, 0], sizes = [8, 32], strides = [1, 1]} : vector<64x32xf32> to vector<8x32xf32>
    %16 = vector.extract_strided_slice %8 {offsets = [56, 0], sizes = [8, 32], strides = [1, 1]} : vector<64x32xf32> to vector<8x32xf32>
    %17 = tpu.concatenate %9, %10, %11, %12, %13, %14, %15, %16 in 1 : vector<8x32xf32>, vector<8x32xf32>, vector<8x32xf32>, vector<8x32xf32>, vector<8x32xf32>, vector<8x32xf32>, vector<8x32xf32>, vector<8x32xf32> -> vector<8x256xf32>
    %18 = vector.extract_strided_slice %17 {offsets = [0, 0], sizes = [1, 128], strides = [1, 1]} : vector<8x256xf32> to vector<1x128xf32>
    %19 = vector.extract_strided_slice %17 {offsets = [1, 0], sizes = [1, 128], strides = [1, 1]} : vector<8x256xf32> to vector<1x128xf32>
    %20 = vector.extract_strided_slice %17 {offsets = [2, 0], sizes = [1, 128], strides = [1, 1]} : vector<8x256xf32> to vector<1x128xf32>
    %21 = vector.extract_strided_slice %17 {offsets = [3, 0], sizes = [1, 128], strides = [1, 1]} : vector<8x256xf32> to vector<1x128xf32>
    %22 = tpu.concatenate %18, %19, %20, %21 in 1 : vector<1x128xf32>, vector<1x128xf32>, vector<1x128xf32>, vector<1x128xf32> -> vector<1x512xf32>
    %23 = vector.extract_strided_slice %17 {offsets = [2, 0], sizes = [1, 128], strides = [1, 1]} : vector<8x256xf32> to vector<1x128xf32>
    %24 = vector.extract_strided_slice %17 {offsets = [3, 0], sizes = [1, 128], strides = [1, 1]} : vector<8x256xf32> to vector<1x128xf32>
    %25 = vector.extract_strided_slice %17 {offsets = [4, 0], sizes = [1, 128], strides = [1, 1]} : vector<8x256xf32> to vector<1x128xf32>
    %26 = vector.extract_strided_slice %17 {offsets = [5, 0], sizes = [1, 128], strides = [1, 1]} : vector<8x256xf32> to vector<1x128xf32>
    %27 = tpu.concatenate %23, %24, %25, %26 in 1 : vector<1x128xf32>, vector<1x128xf32>, vector<1x128xf32>, vector<1x128xf32> -> vector<1x512xf32>
    %28 = vector.extract_strided_slice %17 {offsets = [4, 0], sizes = [1, 128], strides = [1, 1]} : vector<8x256xf32> to vector<1x128xf32>
    %29 = vector.extract_strided_slice %17 {offsets = [5, 0], sizes = [1, 128], strides = [1, 1]} : vector<8x256xf32> to vector<1x128xf32>
    %30 = vector.extract_strided_slice %17 {offsets = [6, 0], sizes = [1, 128], strides = [1, 1]} : vector<8x256xf32> to vector<1x128xf32>
    %31 = vector.extract_strided_slice %17 {offsets = [7, 0], sizes = [1, 128], strides = [1, 1]} : vector<8x256xf32> to vector<1x128xf32>
    %32 = tpu.concatenate %28, %29, %30, %31 in 1 : vector<1x128xf32>, vector<1x128xf32>, vector<1x128xf32>, vector<1x128xf32> -> vector<1x512xf32>
    %33 = vector.extract_strided_slice %17 {offsets = [0, 64], sizes = [1, 128], strides = [1, 1]} : vector<8x256xf32> to vector<1x128xf32>
    %34 = vector.extract_strided_slice %17 {offsets = [1, 64], sizes = [1, 128], strides = [1, 1]} : vector<8x256xf32> to vector<1x128xf32>
    %35 = vector.extract_strided_slice %17 {offsets = [2, 64], sizes = [1, 128], strides = [1, 1]} : vector<8x256xf32> to vector<1x128xf32>
    %36 = vector.extract_strided_slice %17 {offsets = [3, 64], sizes = [1, 128], strides = [1, 1]} : vector<8x256xf32> to vector<1x128xf32>
    %37 = tpu.concatenate %33, %34, %35, %36 in 1 : vector<1x128xf32>, vector<1x128xf32>, vector<1x128xf32>, vector<1x128xf32> -> vector<1x512xf32>
    %38 = vector.extract_strided_slice %17 {offsets = [2, 64], sizes = [1, 128], strides = [1, 1]} : vector<8x256xf32> to vector<1x128xf32>
    %39 = vector.extract_strided_slice %17 {offsets = [3, 64], sizes = [1, 128], strides = [1, 1]} : vector<8x256xf32> to vector<1x128xf32>
    %40 = vector.extract_strided_slice %17 {offsets = [4, 64], sizes = [1, 128], strides = [1, 1]} : vector<8x256xf32> to vector<1x128xf32>
    %41 = vector.extract_strided_slice %17 {offsets = [5, 64], sizes = [1, 128], strides = [1, 1]} : vector<8x256xf32> to vector<1x128xf32>
    %42 = tpu.concatenate %38, %39, %40, %41 in 1 : vector<1x128xf32>, vector<1x128xf32>, vector<1x128xf32>, vector<1x128xf32> -> vector<1x512xf32>
    %43 = vector.extract_strided_slice %17 {offsets = [4, 64], sizes = [1, 128], strides = [1, 1]} : vector<8x256xf32> to vector<1x128xf32>
    %44 = vector.extract_strided_slice %17 {offsets = [5, 64], sizes = [1, 128], strides = [1, 1]} : vector<8x256xf32> to vector<1x128xf32>
    %45 = vector.extract_strided_slice %17 {offsets = [6, 64], sizes = [1, 128], strides = [1, 1]} : vector<8x256xf32> to vector<1x128xf32>
    %46 = vector.extract_strided_slice %17 {offsets = [7, 64], sizes = [1, 128], strides = [1, 1]} : vector<8x256xf32> to vector<1x128xf32>
    %47 = tpu.concatenate %43, %44, %45, %46 in 1 : vector<1x128xf32>, vector<1x128xf32>, vector<1x128xf32>, vector<1x128xf32> -> vector<1x512xf32>
    %48 = vector.extract_strided_slice %17 {offsets = [0, 128], sizes = [1, 128], strides = [1, 1]} : vector<8x256xf32> to vector<1x128xf32>
    %49 = vector.extract_strided_slice %17 {offsets = [1, 128], sizes = [1, 128], strides = [1, 1]} : vector<8x256xf32> to vector<1x128xf32>
    %50 = vector.extract_strided_slice %17 {offsets = [2, 128], sizes = [1, 128], strides = [1, 1]} : vector<8x256xf32> to vector<1x128xf32>
    %51 = vector.extract_strided_slice %17 {offsets = [3, 128], sizes = [1, 128], strides = [1, 1]} : vector<8x256xf32> to vector<1x128xf32>
    %52 = tpu.concatenate %48, %49, %50, %51 in 1 : vector<1x128xf32>, vector<1x128xf32>, vector<1x128xf32>, vector<1x128xf32> -> vector<1x512xf32>
    %53 = vector.extract_strided_slice %17 {offsets = [2, 128], sizes = [1, 128], strides = [1, 1]} : vector<8x256xf32> to vector<1x128xf32>
    %54 = vector.extract_strided_slice %17 {offsets = [3, 128], sizes = [1, 128], strides = [1, 1]} : vector<8x256xf32> to vector<1x128xf32>
    %55 = vector.extract_strided_slice %17 {offsets = [4, 128], sizes = [1, 128], strides = [1, 1]} : vector<8x256xf32> to vector<1x128xf32>
    %56 = vector.extract_strided_slice %17 {offsets = [5, 128], sizes = [1, 128], strides = [1, 1]} : vector<8x256xf32> to vector<1x128xf32>
    %57 = tpu.concatenate %53, %54, %55, %56 in 1 : vector<1x128xf32>, vector<1x128xf32>, vector<1x128xf32>, vector<1x128xf32> -> vector<1x512xf32>
    %58 = vector.extract_strided_slice %17 {offsets = [4, 128], sizes = [1, 128], strides = [1, 1]} : vector<8x256xf32> to vector<1x128xf32>
    %59 = vector.extract_strided_slice %17 {offsets = [5, 128], sizes = [1, 128], strides = [1, 1]} : vector<8x256xf32> to vector<1x128xf32>
    %60 = vector.extract_strided_slice %17 {offsets = [6, 128], sizes = [1, 128], strides = [1, 1]} : vector<8x256xf32> to vector<1x128xf32>
    %61 = vector.extract_strided_slice %17 {offsets = [7, 128], sizes = [1, 128], strides = [1, 1]} : vector<8x256xf32> to vector<1x128xf32>
    %62 = tpu.concatenate %58, %59, %60, %61 in 1 : vector<1x128xf32>, vector<1x128xf32>, vector<1x128xf32>, vector<1x128xf32> -> vector<1x512xf32>
    %63 = tpu.concatenate %22, %27, %32, %37, %42, %47, %52, %57, %62 in 0 : vector<1x512xf32>, vector<1x512xf32>, vector<1x512xf32>, vector<1x512xf32>, vector<1x512xf32>, vector<1x512xf32>, vector<1x512xf32>, vector<1x512xf32>, vector<1x512xf32> -> vector<9x512xf32>
    %64 = arith.truncf %63 : vector<9x512xf32> to vector<9x512xbf16>
    %c0_7 = arith.constant 0 : index
    %c0_8 = arith.constant 0 : index
    %65 = vector.load %arg4[%c0_7, %c0_8] : memref<512x64xbf16, #tpu.memory_space<vmem>>, vector<512x64xbf16>
    %cst_9 = arith.constant dense<0.000000e+00> : vector<9x64xf32>
    %66 = tpu.matmul %64, %65, %cst_9 {dimension_numbers = #tpu.dot_dimension_numbers<[1], [0], [0], [1], [0, 0, 1, 1], [], []>} : vector<9x512xbf16>, vector<512x64xbf16>, vector<9x64xf32> -> vector<9x64xf32>
    %c0_10 = arith.constant 0 : index
    %c0_11 = arith.constant 0 : index
    %67 = vector.load %arg5[%c0_10, %c0_11] : memref<1x64xf32, #tpu.memory_space<vmem>>, vector<1x64xf32>
    %68 = vector.broadcast %67 : vector<1x64xf32> to vector<9x64xf32>
    %69 = arith.addf %66, %68 : vector<9x64xf32>
    %cst_12 = arith.constant 0.000000e+00 : f32
    %70 = vector.broadcast %cst_12 : f32 to vector<9x64xf32>
    %71 = arith.maximumf %69, %70 : vector<9x64xf32>
    %72 = vector.extract_strided_slice %71 {offsets = [0, 0], sizes = [3, 64], strides = [1, 1]} : vector<9x64xf32> to vector<3x64xf32>
    %73 = vector.extract_strided_slice %71 {offsets = [3, 0], sizes = [3, 64], strides = [1, 1]} : vector<9x64xf32> to vector<3x64xf32>
    %74 = vector.extract_strided_slice %71 {offsets = [6, 0], sizes = [3, 64], strides = [1, 1]} : vector<9x64xf32> to vector<3x64xf32>
    %75 = tpu.concatenate %72, %73, %74 in 1 : vector<3x64xf32>, vector<3x64xf32>, vector<3x64xf32> -> vector<3x192xf32>
    %76 = vector.extract_strided_slice %75 {offsets = [0, 0], sizes = [1, 192], strides = [1, 1]} : vector<3x192xf32> to vector<1x192xf32>
    %77 = vector.extract_strided_slice %75 {offsets = [1, 0], sizes = [1, 192], strides = [1, 1]} : vector<3x192xf32> to vector<1x192xf32>
    %78 = vector.extract_strided_slice %75 {offsets = [2, 0], sizes = [1, 192], strides = [1, 1]} : vector<3x192xf32> to vector<1x192xf32>
    %79 = tpu.concatenate %76, %77, %78 in 1 : vector<1x192xf32>, vector<1x192xf32>, vector<1x192xf32> -> vector<1x576xf32>
    %80 = arith.truncf %79 : vector<1x576xf32> to vector<1x576xbf16>
    %c0_13 = arith.constant 0 : index
    %c0_14 = arith.constant 0 : index
    %81 = vector.load %arg6[%c0_13, %c0_14] : memref<576x64xbf16, #tpu.memory_space<vmem>>, vector<576x64xbf16>
    %cst_15 = arith.constant dense<0.000000e+00> : vector<1x64xf32>
    %82 = tpu.matmul %80, %81, %cst_15 {dimension_numbers = #tpu.dot_dimension_numbers<[1], [0], [0], [1], [0, 0, 1, 1], [], []>} : vector<1x576xbf16>, vector<576x64xbf16>, vector<1x64xf32> -> vector<1x64xf32>
    %c0_16 = arith.constant 0 : index
    %c0_17 = arith.constant 0 : index
    %83 = vector.load %arg7[%c0_16, %c0_17] : memref<1x64xf32, #tpu.memory_space<vmem>>, vector<1x64xf32>
    %84 = arith.addf %82, %83 : vector<1x64xf32>
    %cst_18 = arith.constant 0.000000e+00 : f32
    %85 = vector.broadcast %cst_18 : f32 to vector<1x64xf32>
    %86 = arith.maximumf %84, %85 : vector<1x64xf32>
    %cst_19 = arith.constant 0.000000e+00 : f32
    %87 = vector.broadcast %cst_19 : f32 to vector<7x64xf32>
    %88 = tpu.concatenate %86, %87 in 0 : vector<1x64xf32>, vector<7x64xf32> -> vector<8x64xf32>
    %89 = arith.truncf %88 : vector<8x64xf32> to vector<8x64xbf16>
    %c0_20 = arith.constant 0 : index
    %c0_21 = arith.constant 0 : index
    %90 = vector.load %arg8[%c0_20, %c0_21] : memref<64x128xbf16, #tpu.memory_space<vmem>>, vector<64x128xbf16>
    %cst_22 = arith.constant dense<0.000000e+00> : vector<8x128xf32>
    %91 = tpu.matmul %89, %90, %cst_22 {dimension_numbers = #tpu.dot_dimension_numbers<[1], [0], [0], [1], [0, 0, 1, 1], [], []>} : vector<8x64xbf16>, vector<64x128xbf16>, vector<8x128xf32> -> vector<8x128xf32>
    %c0_23 = arith.constant 0 : index
    %c0_24 = arith.constant 0 : index
    %92 = vector.load %arg9[%c0_23, %c0_24] : memref<1x128xf32, #tpu.memory_space<vmem>>, vector<1x128xf32>
    %93 = vector.broadcast %92 : vector<1x128xf32> to vector<8x128xf32>
    %94 = arith.addf %91, %93 : vector<8x128xf32>
    %c0_25 = arith.constant 0 : index
    %c0_26 = arith.constant 0 : index
    %c0_27 = arith.constant 0 : index
    %95 = vector.load %arg10[%c0_25, %c0_26, %c0_27] : memref<1x8x128xf32, #tpu.memory_space<vmem>>, vector<1x8x128xf32>
    %96 = vector.shape_cast %95 : vector<1x8x128xf32> to vector<8x128xf32>
    %97 = vector.shape_cast %94 : vector<8x128xf32> to vector<1x8x128xf32>
    tpu.vector_store %arg10[%c0_25, %c0_26, %c0_27], %97 {strides = array<i32>} : memref<1x8x128xf32, #tpu.memory_space<vmem>>, vector<1x8x128xf32>,
    return
  }
  func.func @transform_0(%arg0: i32) -> (i32, i32, i32) {
    %c0_i32 = arith.constant 0 : i32
    %c0_i32_0 = arith.constant 0 : i32
    %c0_i32_1 = arith.constant 0 : i32
    return %arg0, %c0_i32, %c0_i32_0 : i32, i32, i32
  }
  func.func @transform_1(%arg0: i32) -> (i32, i32) {
    %c0_i32 = arith.constant 0 : i32
    %c0_i32_0 = arith.constant 0 : i32
    %c0_i32_1 = arith.constant 0 : i32
    return %c0_i32, %c0_i32_0 : i32, i32
  }
  func.func @transform_2(%arg0: i32) -> (i32, i32) {
    %c0_i32 = arith.constant 0 : i32
    %c0_i32_0 = arith.constant 0 : i32
    %c0_i32_1 = arith.constant 0 : i32
    return %c0_i32, %c0_i32_0 : i32, i32
  }
  func.func @transform_3(%arg0: i32) -> (i32, i32) {
    %c0_i32 = arith.constant 0 : i32
    %c0_i32_0 = arith.constant 0 : i32
    %c0_i32_1 = arith.constant 0 : i32
    return %c0_i32, %c0_i32_0 : i32, i32
  }
  func.func @transform_4(%arg0: i32) -> (i32, i32) {
    %c0_i32 = arith.constant 0 : i32
    %c0_i32_0 = arith.constant 0 : i32
    %c0_i32_1 = arith.constant 0 : i32
    return %c0_i32, %c0_i32_0 : i32, i32
  }
  func.func @transform_5(%arg0: i32) -> (i32, i32) {
    %c0_i32 = arith.constant 0 : i32
    %c0_i32_0 = arith.constant 0 : i32
    %c0_i32_1 = arith.constant 0 : i32
    return %c0_i32, %c0_i32_0 : i32, i32
  }
  func.func @transform_6(%arg0: i32) -> (i32, i32) {
    %c0_i32 = arith.constant 0 : i32
    %c0_i32_0 = arith.constant 0 : i32
    %c0_i32_1 = arith.constant 0 : i32
    return %c0_i32, %c0_i32_0 : i32, i32
  }
  func.func @transform_7(%arg0: i32) -> (i32, i32) {
    %c0_i32 = arith.constant 0 : i32
    %c0_i32_0 = arith.constant 0 : i32
    %c0_i32_1 = arith.constant 0 : i32
    return %c0_i32, %c0_i32_0 : i32, i32
  }
  func.func @transform_8(%arg0: i32) -> (i32, i32) {
    %c0_i32 = arith.constant 0 : i32
    %c0_i32_0 = arith.constant 0 : i32
    %c0_i32_1 = arith.constant 0 : i32
    return %c0_i32, %c0_i32_0 : i32, i32
  }
  func.func @transform_9(%arg0: i32) -> (i32, i32, i32) {
    %c0_i32 = arith.constant 0 : i32
    %c0_i32_0 = arith.constant 0 : i32
    %c0_i32_1 = arith.constant 0 : i32
    return %arg0, %c0_i32, %c0_i32_0 : i32, i32, i32
  }
}

</mosaic_0001>

<llo_original>
// kernel: dqn_forward.1
$region0: #{dqn_forward.1}
  #allocation0 [shape = 'u32[]', space=smem, size = 0x4, offset = 0x4, fixed_abs, tag = 'smem constant byte address 0x4 - core index']
  #allocation1 [shape = 'u32[72,128]{1,0:T(1,128)}', space=vmem, size = 0x9000, scoped, tag = 'internal scratch']
  %s0 = inlined_call_operand.vmem [shape: bf16[2,64,256], index: 0, kind: input, shape index: {}]
  %s1 = inlined_call_operand.vmem [shape: bf16[256,32], index: 1, kind: input, shape index: {}]
  %s2 = inlined_call_operand.vmem [shape: f32[1,32], index: 2, kind: input, shape index: {}]
  %s3 = inlined_call_operand.vmem [shape: bf16[512,64], index: 3, kind: input, shape index: {}]
  %s4 = inlined_call_operand.vmem [shape: f32[1,64], index: 4, kind: input, shape index: {}]
  %s5 = inlined_call_operand.vmem [shape: bf16[576,64], index: 5, kind: input, shape index: {}]
  %s6 = inlined_call_operand.vmem [shape: f32[1,64], index: 6, kind: input, shape index: {}]
  %s7 = inlined_call_operand.vmem [shape: bf16[64,128], index: 7, kind: input, shape index: {}]
  %s8 = inlined_call_operand.vmem [shape: f32[1,128], index: 8, kind: input, shape index: {}]
  %s9 = inlined_call_operand.vmem [shape: f32[2,8,128], index: 9, kind: output, shape index: {}]
  %s10 = sld [smem:[#allocation0]]
  $region69: #{dqn_forward.1} parent=0
    _
  %s12 = ssub.s32 1, %s10
  %s13 = scalar_select 0, %s12, %s10
  loop: start=0, step=1, limit=4
  $region2: #{dqn_forward.1} parent=0 // loop_pre_header
    _
  $region3: #{dqn_forward.1} parent=0 // loop_header
    %s15 = sphi 0, %s19
    %p16 = scmp.ge.s32.totalorder %s15, 4
    %s25 = sphi 0, %s27
    %s28 = sphi 0, %s25
    %s29 = sphi 0, %s28
    %s45 = sphi 0, %s29
    %s49 = sphi 0, %s49
    %s51 = sphi 0, %s49
    %s52 = sphi 0, %s51
    %s66 = sphi 0, %s52
    %s70 = sphi 0, %s70
    %s72 = sphi 0, %s70
    %s73 = sphi 0, %s72
    %s87 = sphi 0, %s73
    %s91 = sphi 0, %s91
    %s93 = sphi 0, %s91
    %s94 = sphi 0, %s93
    %s108 = sphi 0, %s94
    %s112 = sphi 0, %s112
    %s114 = sphi 0, %s112
    %s115 = sphi 0, %s114
    %s129 = sphi 0, %s115
    %s133 = sphi 0, %s133
    %s135 = sphi 0, %s133
    %s136 = sphi 0, %s135
    %s150 = sphi 0, %s136
    %s154 = sphi 0, %s154
    %s156 = sphi 0, %s154
    %s157 = sphi 0, %s156
    %s171 = sphi 0, %s157
    %s175 = sphi 0, %s175
    %s177 = sphi 0, %s175
    %s178 = sphi 0, %s177
    %s192 = sphi 0, %s178
    %s196 = sphi 0, %s196
    %s198 = sphi 0, %s196
    %s199 = sphi 0, %s198
    %s213 = sphi 0, %s199
    %s219 = sphi 0, %s221
    %s222 = sphi 0, %s219
    %s223 = sphi 0, %s222
    %s239 = sphi 0, %s223
  $region4: #{dqn_forward.1} parent=0 // loop_header_branch
    %18 = sbr.rel (%p16) target = $region8
  $region5: #{dqn_forward.1} parent=0 // loop_body
    %s20 = ssub.s32 %s15, 1
    %s21 = ssub.s32 %s15, 2
    %s22 = sadd.s32 %s15, 1
    %s23 = ssub.s32 %s15, %s22
    %p24 = scmp.eq.s32.totalorder %s23, 0
    %s26 = sadd.s32 %s25, 1
    %s27 = scalar_select %p24, %s25, %s26
    %p30 = pneg %p24
    %p31 = scmp.eq.s32.totalorder %s15, 1
    %p32 = por %p30, %p31
    %p33 = scmp.ne.s32.totalorder %s25, %s28
    %p34 = scmp.eq.s32.totalorder %s15, 0
    %p35 = por %p33, %p34
    %p36 = scmp.ne.s32.totalorder %s25, %s28
    %p37 = scmp.eq.s32.totalorder %s20, 1
    %p38 = por %p36, %p37
    %p39 = scmp.ne.s32.totalorder %s28, %s29
    %p40 = scmp.eq.s32.totalorder %s20, 0
    %p41 = por %p39, %p40
    %p42 = scmp.ne.s32.totalorder %s28, %s29
    %p43 = scmp.eq.s32.totalorder %s21, 1
    %p44 = por %p42, %p43
    %p46 = scmp.ne.s32.totalorder %s29, %s45
    %p47 = scmp.eq.s32.totalorder %s21, 0
    %p48 = por %p46, %p47
    %s50 = sadd.s32 %s49, 1
    %p53 = scmp.eq.s32.totalorder %s15, 1
    %p54 = scmp.ne.s32.totalorder %s49, %s51
    %p55 = scmp.eq.s32.totalorder %s15, 0
    %p56 = por %p54, %p55
    %p57 = scmp.ne.s32.totalorder %s49, %s51
    %p58 = scmp.eq.s32.totalorder %s20, 1
    %p59 = por %p57, %p58
    %p60 = scmp.ne.s32.totalorder %s51, %s52
    %p61 = scmp.eq.s32.totalorder %s20, 0
    %p62 = por %p60, %p61
    %p63 = scmp.ne.s32.totalorder %s51, %s52
    %p64 = scmp.eq.s32.totalorder %s21, 1
    %p65 = por %p63, %p64
    %p67 = scmp.ne.s32.totalorder %s52, %s66
    %p68 = scmp.eq.s32.totalorder %s21, 0
    %p69 = por %p67, %p68
    %s71 = sadd.s32 %s70, 1
    %p74 = scmp.eq.s32.totalorder %s15, 1
    %p75 = scmp.ne.s32.totalorder %s70, %s72
    %p76 = scmp.eq.s32.totalorder %s15, 0
    %p77 = por %p75, %p76
    %p78 = scmp.ne.s32.totalorder %s70, %s72
    %p79 = scmp.eq.s32.totalorder %s20, 1
    %p80 = por %p78, %p79
    %p81 = scmp.ne.s32.totalorder %s72, %s73
    %p82 = scmp.eq.s32.totalorder %s20, 0
    %p83 = por %p81, %p82
    %p84 = scmp.ne.s32.totalorder %s72, %s73
    %p85 = scmp.eq.s32.totalorder %s21, 1
    %p86 = por %p84, %p85
    %p88 = scmp.ne.s32.totalorder %s73, %s87
    %p89 = scmp.eq.s32.totalorder %s21, 0
    %p90 = por %p88, %p89
    %s92 = sadd.s32 %s91, 1
    %p95 = scmp.eq.s32.totalorder %s15, 1
    %p96 = scmp.ne.s32.totalorder %s91, %s93
    %p97 = scmp.eq.s32.totalorder %s15, 0
    %p98 = por %p96, %p97
    %p99 = scmp.ne.s32.totalorder %s91, %s93
    %p100 = scmp.eq.s32.totalorder %s20, 1
    %p101 = por %p99, %p100
    %p102 = scmp.ne.s32.totalorder %s93, %s94
    %p103 = scmp.eq.s32.totalorder %s20, 0
    %p104 = por %p102, %p103
    %p105 = scmp.ne.s32.totalorder %s93, %s94
    %p106 = scmp.eq.s32.totalorder %s21, 1
    %p107 = por %p105, %p106
    %p109 = scmp.ne.s32.totalorder %s94, %s108
    %p110 = scmp.eq.s32.totalorder %s21, 0
    %p111 = por %p109, %p110
    %s113 = sadd.s32 %s112, 1
    %p116 = scmp.eq.s32.totalorder %s15, 1
    %p117 = scmp.ne.s32.totalorder %s112, %s114
    %p118 = scmp.eq.s32.totalorder %s15, 0
    %p119 = por %p117, %p118
    %p120 = scmp.ne.s32.totalorder %s112, %s114
    %p121 = scmp.eq.s32.totalorder %s20, 1
    %p122 = por %p120, %p121
    %p123 = scmp.ne.s32.totalorder %s114, %s115
    %p124 = scmp.eq.s32.totalorder %s20, 0
    %p125 = por %p123, %p124
    %p126 = scmp.ne.s32.totalorder %s114, %s115
    %p127 = scmp.eq.s32.totalorder %s21, 1
    %p128 = por %p126, %p127
    %p130 = scmp.ne.s32.totalorder %s115, %s129
    %p131 = scmp.eq.s32.totalorder %s21, 0
    %p132 = por %p130, %p131
    %s134 = sadd.s32 %s133, 1
    %p137 = scmp.eq.s32.totalorder %s15, 1
    %p138 = scmp.ne.s32.totalorder %s133, %s135
    %p139 = scmp.eq.s32.totalorder %s15, 0
    %p140 = por %p138, %p139
    %p141 = scmp.ne.s32.totalorder %s133, %s135
    %p142 = scmp.eq.s32.totalorder %s20, 1
    %p143 = por %p141, %p142
    %p144 = scmp.ne.s32.totalorder %s135, %s136
    %p145 = scmp.eq.s32.totalorder %s20, 0
    %p146 = por %p144, %p145
    %p147 = scmp.ne.s32.totalorder %s135, %s136
    %p148 = scmp.eq.s32.totalorder %s21, 1
    %p149 = por %p147, %p148
    %p151 = scmp.ne.s32.totalorder %s136, %s150
    %p152 = scmp.eq.s32.totalorder %s21, 0
    %p153 = por %p151, %p152
    %s155 = sadd.s32 %s154, 1
    %p158 = scmp.eq.s32.totalorder %s15, 1
    %p159 = scmp.ne.s32.totalorder %s154, %s156
    %p160 = scmp.eq.s32.totalorder %s15, 0
    %p161 = por %p159, %p160
    %p162 = scmp.ne.s32.totalorder %s154, %s156
    %p163 = scmp.eq.s32.totalorder %s20, 1
    %p164 = por %p162, %p163
    %p165 = scmp.ne.s32.totalorder %s156, %s157
    %p166 = scmp.eq.s32.totalorder %s20, 0
    %p167 = por %p165, %p166
    %p168 = scmp.ne.s32.totalorder %s156, %s157
    %p169 = scmp.eq.s32.totalorder %s21, 1
    %p170 = por %p168, %p169
    %p172 = scmp.ne.s32.totalorder %s157, %s171
    %p173 = scmp.eq.s32.totalorder %s21, 0
    %p174 = por %p172, %p173
    %s176 = sadd.s32 %s175, 1
    %p179 = scmp.eq.s32.totalorder %s15, 1
    %p180 = scmp.ne.s32.totalorder %s175, %s177
    %p181 = scmp.eq.s32.totalorder %s15, 0
    %p182 = por %p180, %p181
    %p183 = scmp.ne.s32.totalorder %s175, %s177
    %p184 = scmp.eq.s32.totalorder %s20, 1
    %p185 = por %p183, %p184
    %p186 = scmp.ne.s32.totalorder %s177, %s178
    %p187 = scmp.eq.s32.totalorder %s20, 0
    %p188 = por %p186, %p187
    %p189 = scmp.ne.s32.totalorder %s177, %s178
    %p190 = scmp.eq.s32.totalorder %s21, 1
    %p191 = por %p189, %p190
    %p193 = scmp.ne.s32.totalorder %s178, %s192
    %p194 = scmp.eq.s32.totalorder %s21, 0
    %p195 = por %p193, %p194
    %s197 = sadd.s32 %s196, 1
    %p200 = scmp.eq.s32.totalorder %s15, 1
    %p201 = scmp.ne.s32.totalorder %s196, %s198
    %p202 = scmp.eq.s32.totalorder %s15, 0
    %p203 = por %p201, %p202
    %p204 = scmp.ne.s32.totalorder %s196, %s198
    %p205 = scmp.eq.s32.totalorder %s20, 1
    %p206 = por %p204, %p205
    %p207 = scmp.ne.s32.totalorder %s198, %s199
    %p208 = scmp.eq.s32.totalorder %s20, 0
    %p209 = por %p207, %p208
    %p210 = scmp.ne.s32.totalorder %s198, %s199
    %p211 = scmp.eq.s32.totalorder %s21, 1
    %p212 = por %p210, %p211
    %p214 = scmp.ne.s32.totalorder %s199, %s213
    %p215 = scmp.eq.s32.totalorder %s21, 0
    %p216 = por %p214, %p215
    %s217 = ssub.s32 %s15, %s22
    %p218 = scmp.eq.s32.totalorder %s217, 0
    %s220 = sadd.s32 %s219, 1
    %s221 = scalar_select %p218, %s219, %s220
    %p224 = pneg %p218
    %p225 = scmp.eq.s32.totalorder %s15, 1
    %p226 = por %p224, %p225
    %p227 = scmp.ne.s32.totalorder %s219, %s222
    %p228 = scmp.eq.s32.totalorder %s15, 0
    %p229 = por %p227, %p228
    %p230 = scmp.ne.s32.totalorder %s219, %s222
    %p231 = scmp.eq.s32.totalorder %s20, 1
    %p232 = por %p230, %p231
    %p233 = scmp.ne.s32.totalorder %s222, %s223
    %p234 = scmp.eq.s32.totalorder %s20, 0
    %p235 = por %p233, %p234
    %p236 = scmp.ne.s32.totalorder %s222, %s223
    %p237 = scmp.eq.s32.totalorder %s21, 1
    %p238 = por %p236, %p237
    %p240 = scmp.ne.s32.totalorder %s223, %s239
    %p241 = scmp.eq.s32.totalorder %s21, 0
    %p242 = por %p240, %p241
    %p243 = scmp.le.s32.totalorder 1, %s15
    %p244 = scmp.lt.s32.totalorder %s15, 3
    %p245 = pnand %p243, %p244
    %p246 = pneg %p245
    // Predicated region
    $region9: #{dqn_forward.1} parent=5 // pred_check
      _
    $region10: #{dqn_forward.1} parent=5 // pred_check_branch
      %248 = sbr.rel (%p245) target = $region12
    $region11: #{dqn_forward.1} parent=5 // pred_region
      %s249 = ssub.s32 %s15, 1
      // Predicated region
      $region13: #{dqn_forward.1} parent=11 // pred_check
        %p250 = pneg %p62
      $region14: #{dqn_forward.1} parent=11 // pred_check_branch
        %252 = sbr.rel (%p250) target = $region16
      $region15: #{dqn_forward.1} parent=11 // pred_region
        _
      $region16: #{dqn_forward.1} parent=11 // pred_fallthru
        _
      // Predicated region
      $region17: #{dqn_forward.1} parent=11 // pred_check
        %p253 = pneg %p83
      $region18: #{dqn_forward.1} parent=11 // pred_check_branch
        %255 = sbr.rel (%p253) target = $region20
      $region19: #{dqn_forward.1} parent=11 // pred_region
        _
      $region20: #{dqn_forward.1} parent=11 // pred_fallthru
        _
      // Predicated region
      $region21: #{dqn_forward.1} parent=11 // pred_check
        %p256 = pneg %p104
      $region22: #{dqn_forward.1} parent=11 // pred_check_branch
        %258 = sbr.rel (%p256) target = $region24
      $region23: #{dqn_forward.1} parent=11 // pred_region
        _
      $region24: #{dqn_forward.1} parent=11 // pred_fallthru
        _
      // Predicated region
      $region25: #{dqn_forward.1} parent=11 // pred_check
        %p259 = pneg %p125
      $region26: #{dqn_forward.1} parent=11 // pred_check_branch
        %261 = sbr.rel (%p259) target = $region28
      $region27: #{dqn_forward.1} parent=11 // pred_region
        _
      $region28: #{dqn_forward.1} parent=11 // pred_fallthru
        _
      // Predicated region
      $region29: #{dqn_forward.1} parent=11 // pred_check
        %p262 = pneg %p146
      $region30: #{dqn_forward.1} parent=11 // pred_check_branch
        %264 = sbr.rel (%p262) target = $region32
      $region31: #{dqn_forward.1} parent=11 // pred_region
        _
      $region32: #{dqn_forward.1} parent=11 // pred_fallthru
        _
      // Predicated region
      $region33: #{dqn_forward.1} parent=11 // pred_check
        %p265 = pneg %p167
      $region34: #{dqn_forward.1} parent=11 // pred_check_branch
        %267 = sbr.rel (%p265) target = $region36
      $region35: #{dqn_forward.1} parent=11 // pred_region
        _
      $region36: #{dqn_forward.1} parent=11 // pred_fallthru
        _
      // Predicated region
      $region37: #{dqn_forward.1} parent=11 // pred_check
        %p268 = pneg %p188
      $region38: #{dqn_forward.1} parent=11 // pred_check_branch
        %270 = sbr.rel (%p268) target = $region40
      $region39: #{dqn_forward.1} parent=11 // pred_region
        _
      $region40: #{dqn_forward.1} parent=11 // pred_fallthru
        _
      // Predicated region
      $region41: #{dqn_forward.1} parent=11 // pred_check
        %p271 = pneg %p209
      $region42: #{dqn_forward.1} parent=11 // pred_check_branch
        %273 = sbr.rel (%p271) target = $region44
      $region43: #{dqn_forward.1} parent=11 // pred_region
        _
      $region44: #{dqn_forward.1} parent=11 // pred_fallthru
        _
    $region12: #{dqn_forward.1} parent=5 // pred_fallthru
      _
    %p274 = scmp.lt.s32.totalorder %s15, 2
    // Predicated region
    $region45: #{dqn_forward.1} parent=5 // pred_check
      %p275 = pneg %p274
    $region46: #{dqn_forward.1} parent=5 // pred_check_branch
      %277 = sbr.rel (%p275) target = $region48
    $region47: #{dqn_forward.1} parent=5 // pred_region
      // Predicated region
      $region49: #{dqn_forward.1} parent=47 // pred_check
        %p278 = pneg %p35
      $region50: #{dqn_forward.1} parent=47 // pred_check_branch
        %280 = sbr.rel (%p278) target = $region52
      $region51: #{dqn_forward.1} parent=47 // pred_region
        %p281 = scmp.lt.s32.totalorder %s15, 1
        %s282 = scalar_select %p281, %s15, 1
        %s283 = smul.addr %s282, 16
        %s284 = smul.addr %s283, 4
        %s285 = scalar_lea.vmem %s0, %s284
      $region52: #{dqn_forward.1} parent=47 // pred_fallthru
        _
    $region48: #{dqn_forward.1} parent=5 // pred_fallthru
      _
    %p286 = scmp.le.s32.totalorder 1, %s15
    %p287 = scmp.lt.s32.totalorder %s15, 3
    %p288 = pnand %p286, %p287
    %p289 = pneg %p288
    // Predicated region
    $region53: #{dqn_forward.1} parent=5 // pred_check
      _
    $region54: #{dqn_forward.1} parent=5 // pred_check_branch
      %291 = sbr.rel (%p288) target = $region56
    $region55: #{dqn_forward.1} parent=5 // pred_region
      %s292 = ssub.s32 %s15, 1
      %p293 = scmp.lt.s32.totalorder %s20, 1
      %s294 = scalar_select %p293, %s20, 1
      %s295 = smul.addr %s294, 16
      %s296 = smul.addr %s295, 4
      %s297 = scalar_lea.vmem %s0, %s296
      %p298 = pneg %p41
      %p299 = pneg %p38
      %p300 = pneg %p62
      %p301 = pneg %p59
      %p302 = pneg %p83
      %p303 = pneg %p80
      %p304 = pneg %p104
      %p305 = pneg %p101
      %p306 = pneg %p125
      %p307 = pneg %p122
      %p308 = pneg %p146
      %p309 = pneg %p143
      %p310 = pneg %p167
      %p311 = pneg %p164
      %p312 = pneg %p188
      %p313 = pneg %p185
      %p314 = pneg %p209
      %p315 = pneg %p206
      %p316 = pneg %p235
      %p317 = pneg %p232
      %p318 = scmp.lt.s32.totalorder %s20, 1
      %s319 = scalar_select %p318, %s20, 1
      %s320 = smul.addr %s319, 8
      %s321 = scalar_lea.vmem %s9, %s320
      %p322 = scmp.lt.s32.totalorder %s20, 1
      %s323 = scalar_select %p322, %s20, 1
      %s324 = smul.addr %s323, 16
      %s325 = smul.addr %s324, 4
      %s326 = scalar_lea.vmem %s0, %s325
      %p327 = scmp.lt.s32.totalorder %s20, 1
      %s328 = scalar_select %p327, %s20, 1
      %s329 = smul.addr %s328, 8
      %s330 = scalar_lea.vmem %s9, %s329
      %v332 = vld [vmem:[%s326] sm:$0xff]
      %v333 = vld [vmem:[%s326 + $0x8] sm:$0xff]
      %v334 = vld [vmem:[%s326 + $0x10] sm:$0xff]
      %v335 = vld [vmem:[%s326 + $0x18] sm:$0xff]
      %v336 = vld [vmem:[%s326 + $0x20] sm:$0xff]
      %v337 = vld [vmem:[%s326 + $0x28] sm:$0xff]
      %v338 = vld [vmem:[%s326 + $0x30] sm:$0xff]
      %v339 = vld [vmem:[%s326 + $0x38] sm:$0xff]
      %v340 = vld [vmem:[%s1] sm:$0xf]
      %v341 = vld [vmem:[%s1 + $0x4] sm:$0xf]
      %v342 = vld [vmem:[%s1 + $0x8] sm:$0xf]
      %v343 = vld [vmem:[%s1 + $0xc] sm:$0xf]
      %v344 = vld [vmem:[%s1 + $0x10] sm:$0xf]
      %v345 = vld [vmem:[%s1 + $0x14] sm:$0xf]
      %v346 = vld [vmem:[%s1 + $0x18] sm:$0xf]
      %v347 = vld [vmem:[%s1 + $0x1c] sm:$0xf]
      %v348 = vld [vmem:[%s1 + $0x20] sm:$0xf]
      %v349 = vld [vmem:[%s1 + $0x24] sm:$0xf]
      %v350 = vld [vmem:[%s1 + $0x28] sm:$0xf]
      %v351 = vld [vmem:[%s1 + $0x2c] sm:$0xf]
      %v352 = vld [vmem:[%s1 + $0x30] sm:$0xf]
      %v353 = vld [vmem:[%s1 + $0x34] sm:$0xf]
      %v354 = vld [vmem:[%s1 + $0x38] sm:$0xf]
      %v355 = vld [vmem:[%s1 + $0x3c] sm:$0xf]
      %v356 = vld [vmem:[%s1 + $0x40] sm:$0xf]
      %v357 = vld [vmem:[%s1 + $0x44] sm:$0xf]
      %v358 = vld [vmem:[%s1 + $0x48] sm:$0xf]
      %v359 = vld [vmem:[%s1 + $0x4c] sm:$0xf]
      %v360 = vld [vmem:[%s1 + $0x50] sm:$0xf]
      %v361 = vld [vmem:[%s1 + $0x54] sm:$0xf]
      %v362 = vld [vmem:[%s1 + $0x58] sm:$0xf]
      %v363 = vld [vmem:[%s1 + $0x5c] sm:$0xf]
      %v364 = vld [vmem:[%s1 + $0x60] sm:$0xf]
      %v365 = vld [vmem:[%s1 + $0x64] sm:$0xf]
      %v366 = vld [vmem:[%s1 + $0x68] sm:$0xf]
      %v367 = vld [vmem:[%s1 + $0x6c] sm:$0xf]
      %v368 = vld [vmem:[%s1 + $0x70] sm:$0xf]
      %v369 = vld [vmem:[%s1 + $0x74] sm:$0xf]
      %v370 = vld [vmem:[%s1 + $0x78] sm:$0xf]
      %v371 = vld [vmem:[%s1 + $0x7c] sm:$0xf]
      %v372 = vld [vmem:[%s2] sm:$0x1]
      %v374 = vperm.slane %v372, 0
      %v384 = vunpack.c.l.b16 %v332
      %v385 = vunpack.c.h.b16 %v332
      %v386 = vunpack.c.l.b16 %v333
      %v387 = vunpack.c.h.b16 %v333
      %v388 = vunpack.c.l.b16 %v334
      %v389 = vunpack.c.h.b16 %v334
      %v390 = vunpack.c.l.b16 %v335
      %v391 = vunpack.c.h.b16 %v335
      %v392 = vunpack.c.l.b16 %v336
      %v393 = vunpack.c.h.b16 %v336
      %v394 = vunpack.c.l.b16 %v337
      %v395 = vunpack.c.h.b16 %v337
      %v396 = vunpack.c.l.b16 %v338
      %v397 = vunpack.c.h.b16 %v338
      %v398 = vunpack.c.l.b16 %v339
      %v399 = vunpack.c.h.b16 %v339
      %v400 = vpack.c.b16 %v386, %v384
      %v401 = vpack.c.b16 %v387, %v385
      %v402 = vpack.c.b16 %v390, %v388
      %v403 = vpack.c.b16 %v391, %v389
      %v404 = vpack.c.b16 %v394, %v392
      %v405 = vpack.c.b16 %v395, %v393
      %v406 = vpack.c.b16 %v398, %v396
      %v407 = vpack.c.b16 %v399, %v397
      %v448 = vunpack.c.l.b16 %v340
      %v449 = vunpack.c.l.b16 %v341
      %v450 = vunpack.c.l.b16 %v342
      %v451 = vunpack.c.l.b16 %v343
      %v452 = vunpack.c.l.b16 %v344
      %v453 = vunpack.c.l.b16 %v345
      %v454 = vunpack.c.l.b16 %v346
      %v455 = vunpack.c.l.b16 %v347
      %v456 = vunpack.c.l.b16 %v348
      %v457 = vunpack.c.l.b16 %v349
      %v458 = vunpack.c.l.b16 %v350
      %v459 = vunpack.c.l.b16 %v351
      %v460 = vunpack.c.l.b16 %v352
      %v461 = vunpack.c.l.b16 %v353
      %v462 = vunpack.c.l.b16 %v354
      %v463 = vunpack.c.l.b16 %v355
      %v464 = vunpack.c.l.b16 %v356
      %v465 = vunpack.c.l.b16 %v357
      %v466 = vunpack.c.l.b16 %v358
      %v467 = vunpack.c.l.b16 %v359
      %v468 = vunpack.c.l.b16 %v360
      %v469 = vunpack.c.l.b16 %v361
      %v470 = vunpack.c.l.b16 %v362
      %v471 = vunpack.c.l.b16 %v363
      %v472 = vunpack.c.l.b16 %v364
      %v473 = vunpack.c.l.b16 %v365
      %v474 = vunpack.c.l.b16 %v366
      %v475 = vunpack.c.l.b16 %v367
      %v476 = vunpack.c.l.b16 %v368
      %v477 = vunpack.c.l.b16 %v369
      %v478 = vunpack.c.l.b16 %v370
      %v479 = vunpack.c.l.b16 %v371
      %v480 = vpack.c.b16 %v449, %v448
      %v481 = vpack.c.b16 %v451, %v450
      %v482 = vpack.c.b16 %v453, %v452
      %v483 = vpack.c.b16 %v455, %v454
      %v484 = vpack.c.b16 %v457, %v456
      %v485 = vpack.c.b16 %v459, %v458
      %v486 = vpack.c.b16 %v461, %v460
      %v487 = vpack.c.b16 %v463, %v462
      %v488 = vpack.c.b16 %v465, %v464
      %v489 = vpack.c.b16 %v467, %v466
      %v490 = vpack.c.b16 %v469, %v468
      %v491 = vpack.c.b16 %v471, %v470
      %v492 = vpack.c.b16 %v473, %v472
      %v493 = vpack.c.b16 %v475, %v474
      %v494 = vpack.c.b16 %v477, %v476
      %v495 = vpack.c.b16 %v479, %v478
      %512 = vmatpush.bf16.msra.mxu0 %v487
      %513 = vmatpush.bf16.msra.mxu0 %v486
      %514 = vmatpush.bf16.msra.mxu0 %v485
      %515 = vmatpush.bf16.msra.mxu0 %v484
      %516 = vmatpush.bf16.msra.mxu0 %v483
      %517 = vmatpush.bf16.msra.mxu0 %v482
      %518 = vmatpush.bf16.msra.mxu0 %v481
      %519 = vmatpush.bf16.msra.mxu0 %v480
      %520 = vmatmul.bf16.gmra.mxu0 %v400
      %v521 = vpop.f32.mrf.mxu0
      %v522 = vadd.f32 %v374, %v521
      %v523 = vpop.f32.mrf.mxu0
      %v524 = vadd.f32 %v374, %v523
      %525 = vmatmul.bf16.gmra.mxu0 %v402
      %v526 = vpop.f32.mrf.mxu0
      %v527 = vadd.f32 %v374, %v526
      %v528 = vpop.f32.mrf.mxu0
      %v529 = vadd.f32 %v374, %v528
      %530 = vmatmul.bf16.gmra.mxu0 %v404
      %v531 = vpop.f32.mrf.mxu0
      %v532 = vadd.f32 %v374, %v531
      %v533 = vpop.f32.mrf.mxu0
      %v534 = vadd.f32 %v374, %v533
      %535 = vmatmul.bf16.gmra.mxu0 %v406
      %v536 = vpop.f32.mrf.mxu0
      %v537 = vadd.f32 %v374, %v536
      %v538 = vpop.f32.mrf.mxu0
      %v539 = vadd.f32 %v374, %v538
      %540 = vdwg.mxu0
      %541 = vmatpush.bf16.msra.mxu0 %v495
      %542 = vmatpush.bf16.msra.mxu0 %v494
      %543 = vmatpush.bf16.msra.mxu0 %v493
      %544 = vmatpush.bf16.msra.mxu0 %v492
      %545 = vmatpush.bf16.msra.mxu0 %v491
      %546 = vmatpush.bf16.msra.mxu0 %v490
      %547 = vmatpush.bf16.msra.mxu0 %v489
      %548 = vmatpush.bf16.msra.mxu0 %v488
      %549 = vmatmul.bf16.gmra.mxu0 %v401
      %v550 = vpop.f32.mrf.mxu0
      %v551 = vadd.f32 %v522, %v550
      %v552 = vpop.f32.mrf.mxu0
      %v553 = vadd.f32 %v524, %v552
      %554 = vmatmul.bf16.gmra.mxu0 %v403
      %v555 = vpop.f32.mrf.mxu0
      %v556 = vadd.f32 %v527, %v555
      %v557 = vpop.f32.mrf.mxu0
      %v558 = vadd.f32 %v529, %v557
      %559 = vmatmul.bf16.gmra.mxu0 %v405
      %v560 = vpop.f32.mrf.mxu0
      %v561 = vadd.f32 %v532, %v560
      %v562 = vpop.f32.mrf.mxu0
      %v563 = vadd.f32 %v534, %v562
      %564 = vmatmul.bf16.gmra.mxu0 %v407
      %v565 = vpop.f32.mrf.mxu0
      %v566 = vadd.f32 %v537, %v565
      %v567 = vpop.f32.mrf.mxu0
      %v568 = vadd.f32 %v539, %v567
      %569 = vdwg.mxu0
      %v570 = vmax.f32 %v551, 0.0
      %v571 = vmax.f32 %v553, 0.0
      %v572 = vmax.f32 %v556, 0.0
      %v573 = vmax.f32 %v558, 0.0
      %v574 = vmax.f32 %v561, 0.0
      %v575 = vmax.f32 %v563, 0.0
      %v576 = vmax.f32 %v566, 0.0
      %v577 = vmax.f32 %v568, 0.0
      %579 = vrot.lane.b32.xlu0 %v571, 32
      %v580 = vpop.permute.xlu0 %579
      %583 = vrot.lane.b32.xlu0 %v572, 64
      %v584 = vpop.permute.xlu0 %583
      %587 = vrot.lane.b32.xlu0 %v573, 96
      %v588 = vpop.permute.xlu0 %587
      %591 = vrot.lane.b32.xlu0 %v575, 32
      %v592 = vpop.permute.xlu0 %591
      %595 = vrot.lane.b32.xlu0 %v576, 64
      %v596 = vpop.permute.xlu0 %595
      %599 = vrot.lane.b32.xlu0 %v577, 96
      %v600 = vpop.permute.xlu0 %599
      %vm602 = vcmask 261120
      %v603 = vsel %vm602, %v570, %v580
      %vm604 = vcmask 523264
      %v605 = vsel %vm604, %v603, %v584
      %vm606 = vcmask 785408
      %v607 = vsel %vm606, %v605, %v588
      %v608 = vsel %vm602, %v574, %v592
      %v609 = vsel %vm604, %v608, %v596
      %v610 = vsel %vm606, %v609, %v600
      %v612 = vrot.slane %v607, 1
      %v614 = vrot.slane %v607, 2
      %v616 = vrot.slane %v607, 3
      %619 = vrot.lane.b32.xlu0 %v607, 64
      %v620 = vpop.permute.xlu0 %619
      %621 = vrot.lane.b32.xlu0 %v610, 64
      %v622 = vpop.permute.xlu0 %621
      %v623 = vsel %vm604, %v620, %v622
      %v624 = vrot.slane %v610, 1
      %625 = vrot.lane.b32.xlu0 %v612, 64
      %v626 = vpop.permute.xlu0 %625
      %627 = vrot.lane.b32.xlu0 %v624, 64
      %v628 = vpop.permute.xlu0 %627
      %v629 = vsel %vm604, %v626, %v628
      %v630 = vrot.slane %v610, 2
      %631 = vrot.lane.b32.xlu0 %v614, 64
      %v632 = vpop.permute.xlu0 %631
      %633 = vrot.lane.b32.xlu0 %v630, 64
      %v634 = vpop.permute.xlu0 %633
      %v635 = vsel %vm604, %v632, %v634
      %v636 = vrot.slane %v610, 3
      %637 = vrot.lane.b32.xlu0 %v616, 64
      %v638 = vpop.permute.xlu0 %637
      %639 = vrot.lane.b32.xlu0 %v636, 64
      %v640 = vpop.permute.xlu0 %639
      %v641 = vsel %vm604, %v638, %v640
      %v642 = vrot.slane %v612, 1
      %v643 = vrot.slane %v614, 1
      %v644 = vrot.slane %v616, 1
      %v648 = vrot.slane %v612, 2
      %v649 = vrot.slane %v614, 2
      %v650 = vrot.slane %v616, 2
      %v654 = vrot.slane %v623, 5
      %v655 = vrot.slane %v629, 5
      %v656 = vrot.slane %v635, 5
      %v657 = vrot.slane %v641, 5
      %v662 = vrot.slane %v623, 6
      %v663 = vrot.slane %v629, 6
      %v664 = vrot.slane %v635, 6
      %v665 = vrot.slane %v641, 6
      %v670 = vrot.slane %v623, 7
      %v671 = vrot.slane %v629, 7
      %v672 = vrot.slane %v635, 7
      %v673 = vrot.slane %v641, 7
      %v678 = vrot.slane %v624, 2
      %v679 = vrot.slane %v630, 2
      %v680 = vrot.slane %v636, 2
      %v685 = vrot.slane %v624, 3
      %v686 = vrot.slane %v630, 3
      %v687 = vrot.slane %v636, 3
      %v692 = vrot.slane %v610, 4
      %v693 = vrot.slane %v624, 4
      %v694 = vrot.slane %v630, 4
      %v695 = vrot.slane %v636, 4
      %vm700 = vcmask 1040384
      %v701 = vsel %vm700, %v607, %v612
      %v702 = vsel %vm700, %v612, %v642
      %v703 = vsel %vm700, %v614, %v643
      %v704 = vsel %vm700, %v616, %v644
      %vm705 = vcmask 1041408
      %v706 = vsel %vm705, %v701, %v614
      %v707 = vsel %vm705, %v702, %v648
      %v708 = vsel %vm705, %v703, %v649
      %v709 = vsel %vm705, %v704, %v650
      %vm710 = vcmask 1042432
      %v711 = vsel %vm710, %v706, %v654
      %v712 = vsel %vm710, %v707, %v655
      %v713 = vsel %vm710, %v708, %v656
      %v714 = vsel %vm710, %v709, %v657
      %vm715 = vcmask 1043456
      %v716 = vsel %vm715, %v711, %v662
      %v717 = vsel %vm715, %v712, %v663
      %v718 = vsel %vm715, %v713, %v664
      %v719 = vsel %vm715, %v714, %v665
      %vm720 = vcmask 1044480
      %v721 = vsel %vm720, %v716, %v670
      %v722 = vsel %vm720, %v717, %v671
      %v723 = vsel %vm720, %v718, %v672
      %v724 = vsel %vm720, %v719, %v673
      %vm725 = vcmask 1045504
      %v726 = vsel %vm725, %v721, %v630
      %v727 = vsel %vm725, %v722, %v678
      %v728 = vsel %vm725, %v723, %v679
      %v729 = vsel %vm725, %v724, %v680
      %vm730 = vcmask 1046528
      %v731 = vsel %vm730, %v726, %v636
      %v732 = vsel %vm730, %v727, %v685
      %v733 = vsel %vm730, %v728, %v686
      %v734 = vsel %vm730, %v729, %v687
      %v735 = vpack.c.bf16 %v692, %v731
      %v736 = vpack.c.bf16 %v693, %v732
      %v737 = vpack.c.bf16 %v694, %v733
      %v738 = vpack.c.bf16 %v695, %v734
      %v739 = vld [vmem:[%s3] sm:$0xf]
      %v740 = vld [vmem:[%s3 + $0x4] sm:$0xf]
      %v741 = vld [vmem:[%s3 + $0x8] sm:$0xf]
      %v742 = vld [vmem:[%s3 + $0xc] sm:$0xf]
      %v743 = vld [vmem:[%s3 + $0x10] sm:$0xf]
      %v744 = vld [vmem:[%s3 + $0x14] sm:$0xf]
      %v745 = vld [vmem:[%s3 + $0x18] sm:$0xf]
      %v746 = vld [vmem:[%s3 + $0x1c] sm:$0xf]
      %v747 = vld [vmem:[%s3 + $0x20] sm:$0xf]
      %v748 = vld [vmem:[%s3 + $0x24] sm:$0xf]
      %v749 = vld [vmem:[%s3 + $0x28] sm:$0xf]
      %v750 = vld [vmem:[%s3 + $0x2c] sm:$0xf]
      %v751 = vld [vmem:[%s3 + $0x30] sm:$0xf]
      %v752 = vld [vmem:[%s3 + $0x34] sm:$0xf]
      %v753 = vld [vmem:[%s3 + $0x38] sm:$0xf]
      %v754 = vld [vmem:[%s3 + $0x3c] sm:$0xf]
      %v755 = vld [vmem:[%s3 + $0x40] sm:$0xf]
      %v756 = vld [vmem:[%s3 + $0x44] sm:$0xf]
      %v757 = vld [vmem:[%s3 + $0x48] sm:$0xf]
      %v758 = vld [vmem:[%s3 + $0x4c] sm:$0xf]
      %v759 = vld [vmem:[%s3 + $0x50] sm:$0xf]
      %v760 = vld [vmem:[%s3 + $0x54] sm:$0xf]
      %v761 = vld [vmem:[%s3 + $0x58] sm:$0xf]
      %v762 = vld [vmem:[%s3 + $0x5c] sm:$0xf]
      %v763 = vld [vmem:[%s3 + $0x60] sm:$0xf]
      %v764 = vld [vmem:[%s3 + $0x64] sm:$0xf]
      %v765 = vld [vmem:[%s3 + $0x68] sm:$0xf]
      %v766 = vld [vmem:[%s3 + $0x6c] sm:$0xf]
      %v767 = vld [vmem:[%s3 + $0x70] sm:$0xf]
      %v768 = vld [vmem:[%s3 + $0x74] sm:$0xf]
      %v769 = vld [vmem:[%s3 + $0x78] sm:$0xf]
      %v770 = vld [vmem:[%s3 + $0x7c] sm:$0xf]
      %v771 = vld [vmem:[%s3 + $0x80] sm:$0xf]
      %v772 = vld [vmem:[%s3 + $0x84] sm:$0xf]
      %v773 = vld [vmem:[%s3 + $0x88] sm:$0xf]
      %v774 = vld [vmem:[%s3 + $0x8c] sm:$0xf]
      %v775 = vld [vmem:[%s3 + $0x90] sm:$0xf]
      %v776 = vld [vmem:[%s3 + $0x94] sm:$0xf]
      %v777 = vld [vmem:[%s3 + $0x98] sm:$0xf]
      %v778 = vld [vmem:[%s3 + $0x9c] sm:$0xf]
      %v779 = vld [vmem:[%s3 + $0xa0] sm:$0xf]
      %v780 = vld [vmem:[%s3 + $0xa4] sm:$0xf]
      %v781 = vld [vmem:[%s3 + $0xa8] sm:$0xf]
      %v782 = vld [vmem:[%s3 + $0xac] sm:$0xf]
      %v783 = vld [vmem:[%s3 + $0xb0] sm:$0xf]
      %v784 = vld [vmem:[%s3 + $0xb4] sm:$0xf]
      %v785 = vld [vmem:[%s3 + $0xb8] sm:$0xf]
      %v786 = vld [vmem:[%s3 + $0xbc] sm:$0xf]
      %v787 = vld [vmem:[%s3 + $0xc0] sm:$0xf]
      %v788 = vld [vmem:[%s3 + $0xc4] sm:$0xf]
      %v789 = vld [vmem:[%s3 + $0xc8] sm:$0xf]
      %v790 = vld [vmem:[%s3 + $0xcc] sm:$0xf]
      %v791 = vld [vmem:[%s3 + $0xd0] sm:$0xf]
      %v792 = vld [vmem:[%s3 + $0xd4] sm:$0xf]
      %v793 = vld [vmem:[%s3 + $0xd8] sm:$0xf]
      %v794 = vld [vmem:[%s3 + $0xdc] sm:$0xf]
      %v795 = vld [vmem:[%s3 + $0xe0] sm:$0xf]
      %v796 = vld [vmem:[%s3 + $0xe4] sm:$0xf]
      %v797 = vld [vmem:[%s3 + $0xe8] sm:$0xf]
      %v798 = vld [vmem:[%s3 + $0xec] sm:$0xf]
      %v799 = vld [vmem:[%s3 + $0xf0] sm:$0xf]
      %v800 = vld [vmem:[%s3 + $0xf4] sm:$0xf]
      %v801 = vld [vmem:[%s3 + $0xf8] sm:$0xf]
      %v802 = vld [vmem:[%s3 + $0xfc] sm:$0xf]
      %v803 = vld [vmem:[%s4] sm:$0x1]
      %v805 = vperm.slane %v803, 0
      %v871 = vunpack.c.l.b16 %v739
      %v872 = vunpack.c.l.b16 %v740
      %v873 = vunpack.c.l.b16 %v741
      %v874 = vunpack.c.l.b16 %v742
      %v875 = vunpack.c.l.b16 %v743
      %v876 = vunpack.c.l.b16 %v744
      %v877 = vunpack.c.l.b16 %v745
      %v878 = vunpack.c.l.b16 %v746
      %v879 = vunpack.c.l.b16 %v747
      %v880 = vunpack.c.l.b16 %v748
      %v881 = vunpack.c.l.b16 %v749
      %v882 = vunpack.c.l.b16 %v750
      %v883 = vunpack.c.l.b16 %v751
      %v884 = vunpack.c.l.b16 %v752
      %v885 = vunpack.c.l.b16 %v753
      %v886 = vunpack.c.l.b16 %v754
      %v887 = vunpack.c.l.b16 %v755
      %v888 = vunpack.c.l.b16 %v756
      %v889 = vunpack.c.l.b16 %v757
      %v890 = vunpack.c.l.b16 %v758
      %v891 = vunpack.c.l.b16 %v759
      %v892 = vunpack.c.l.b16 %v760
      %v893 = vunpack.c.l.b16 %v761
      %v894 = vunpack.c.l.b16 %v762
      %v895 = vunpack.c.l.b16 %v763
      %v896 = vunpack.c.l.b16 %v764
      %v897 = vunpack.c.l.b16 %v765
      %v898 = vunpack.c.l.b16 %v766
      %v899 = vunpack.c.l.b16 %v767
      %v900 = vunpack.c.l.b16 %v768
      %v901 = vunpack.c.l.b16 %v769
      %v902 = vunpack.c.l.b16 %v770
      %v903 = vunpack.c.l.b16 %v771
      %v904 = vunpack.c.l.b16 %v772
      %v905 = vunpack.c.l.b16 %v773
      %v906 = vunpack.c.l.b16 %v774
      %v907 = vunpack.c.l.b16 %v775
      %v908 = vunpack.c.l.b16 %v776
      %v909 = vunpack.c.l.b16 %v777
      %v910 = vunpack.c.l.b16 %v778
      %v911 = vunpack.c.l.b16 %v779
      %v912 = vunpack.c.l.b16 %v780
      %v913 = vunpack.c.l.b16 %v781
      %v914 = vunpack.c.l.b16 %v782
      %v915 = vunpack.c.l.b16 %v783
      %v916 = vunpack.c.l.b16 %v784
      %v917 = vunpack.c.l.b16 %v785
      %v918 = vunpack.c.l.b16 %v786
      %v919 = vunpack.c.l.b16 %v787
      %v920 = vunpack.c.l.b16 %v788
      %v921 = vunpack.c.l.b16 %v789
      %v922 = vunpack.c.l.b16 %v790
      %v923 = vunpack.c.l.b16 %v791
      %v924 = vunpack.c.l.b16 %v792
      %v925 = vunpack.c.l.b16 %v793
      %v926 = vunpack.c.l.b16 %v794
      %v927 = vunpack.c.l.b16 %v795
      %v928 = vunpack.c.l.b16 %v796
      %v929 = vunpack.c.l.b16 %v797
      %v930 = vunpack.c.l.b16 %v798
      %v931 = vunpack.c.l.b16 %v799
      %v932 = vunpack.c.l.b16 %v800
      %v933 = vunpack.c.l.b16 %v801
      %v934 = vunpack.c.l.b16 %v802
      %v935 = vpack.c.b16 %v872, %v871
      %v936 = vpack.c.b16 %v874, %v873
      %v937 = vpack.c.b16 %v876, %v875
      %v938 = vpack.c.b16 %v878, %v877
      %v939 = vpack.c.b16 %v880, %v879
      %v940 = vpack.c.b16 %v882, %v881
      %v941 = vpack.c.b16 %v884, %v883
      %v942 = vpack.c.b16 %v886, %v885
      %v943 = vpack.c.b16 %v888, %v887
      %v944 = vpack.c.b16 %v890, %v889
      %v945 = vpack.c.b16 %v892, %v891
      %v946 = vpack.c.b16 %v894, %v893
      %v947 = vpack.c.b16 %v896, %v895
      %v948 = vpack.c.b16 %v898, %v897
      %v949 = vpack.c.b16 %v900, %v899
      %v950 = vpack.c.b16 %v902, %v901
      %v951 = vpack.c.b16 %v904, %v903
      %v952 = vpack.c.b16 %v906, %v905
      %v953 = vpack.c.b16 %v908, %v907
      %v954 = vpack.c.b16 %v910, %v909
      %v955 = vpack.c.b16 %v912, %v911
      %v956 = vpack.c.b16 %v914, %v913
      %v957 = vpack.c.b16 %v916, %v915
      %v958 = vpack.c.b16 %v918, %v917
      %v959 = vpack.c.b16 %v920, %v919
      %v960 = vpack.c.b16 %v922, %v921
      %v961 = vpack.c.b16 %v924, %v923
      %v962 = vpack.c.b16 %v926, %v925
      %v963 = vpack.c.b16 %v928, %v927
      %v964 = vpack.c.b16 %v930, %v929
      %v965 = vpack.c.b16 %v932, %v931
      %v966 = vpack.c.b16 %v934, %v933
      %999 = vmatpush.bf16.msra.mxu0 %v942
      %1000 = vmatpush.bf16.msra.mxu0 %v941
      %1001 = vmatpush.bf16.msra.mxu0 %v940
      %1002 = vmatpush.bf16.msra.mxu0 %v939
      %1003 = vmatpush.bf16.msra.mxu0 %v938
      %1004 = vmatpush.bf16.msra.mxu0 %v937
      %1005 = vmatpush.bf16.msra.mxu0 %v936
      %1006 = vmatpush.bf16.msra.mxu0 %v935
      %1007 = vmatmul.bf16.gmra.mxu0 %v735
      %v1008 = vpop.f32.mrf.mxu0
      %v1009 = vadd.f32 %v805, %v1008
      %v1010 = vpop.f32.mrf.mxu0
      %v1011 = vadd.f32 %v805, %v1010
      %1012 = vdwg.mxu0
      %1013 = vmatpush.bf16.msra.mxu0 %v950
      %1014 = vmatpush.bf16.msra.mxu0 %v949
      %1015 = vmatpush.bf16.msra.mxu0 %v948
      %1016 = vmatpush.bf16.msra.mxu0 %v947
      %1017 = vmatpush.bf16.msra.mxu0 %v946
      %1018 = vmatpush.bf16.msra.mxu0 %v945
      %1019 = vmatpush.bf16.msra.mxu0 %v944
      %1020 = vmatpush.bf16.msra.mxu0 %v943
      %1021 = vmatmul.bf16.gmra.mxu0 %v736
      %v1022 = vpop.f32.mrf.mxu0
      %v1023 = vadd.f32 %v1009, %v1022
      %v1024 = vpop.f32.mrf.mxu0
      %v1025 = vadd.f32 %v1011, %v1024
      %1026 = vdwg.mxu0
      %1027 = vmatpush.bf16.msra.mxu0 %v958
      %1028 = vmatpush.bf16.msra.mxu0 %v957
      %1029 = vmatpush.bf16.msra.mxu0 %v956
      %1030 = vmatpush.bf16.msra.mxu0 %v955
      %1031 = vmatpush.bf16.msra.mxu0 %v954
      %1032 = vmatpush.bf16.msra.mxu0 %v953
      %1033 = vmatpush.bf16.msra.mxu0 %v952
      %1034 = vmatpush.bf16.msra.mxu0 %v951
      %1035 = vmatmul.bf16.gmra.mxu0 %v737
      %v1036 = vpop.f32.mrf.mxu0
      %v1037 = vadd.f32 %v1023, %v1036
      %v1038 = vpop.f32.mrf.mxu0
      %v1039 = vadd.f32 %v1025, %v1038
      %1040 = vdwg.mxu0
      %1041 = vmatpush.bf16.msra.mxu0 %v966
      %1042 = vmatpush.bf16.msra.mxu0 %v965
      %1043 = vmatpush.bf16.msra.mxu0 %v964
      %1044 = vmatpush.bf16.msra.mxu0 %v963
      %1045 = vmatpush.bf16.msra.mxu0 %v962
      %1046 = vmatpush.bf16.msra.mxu0 %v961
      %1047 = vmatpush.bf16.msra.mxu0 %v960
      %1048 = vmatpush.bf16.msra.mxu0 %v959
      %1049 = vmatmul.bf16.gmra.mxu0 %v738
      %v1050 = vpop.f32.mrf.mxu0
      %v1051 = vadd.f32 %v1037, %v1050
      %v1052 = vpop.f32.mrf.mxu0
      %v1053 = vadd.f32 %v1039, %v1052
      %1054 = vdwg.mxu0
      %v1055 = vmax.f32 %v1051, 0.0
      %v1056 = vmax.f32 %v1053, 0.0
      %v1058 = vrot.slane %v1055, 3
      %1059 = vrot.lane.b32.xlu0 %v1058, 64
      %v1060 = vpop.permute.xlu0 %1059
      %v1063 = vrot.slane %v1055, 6
      %v1064 = vrot.slane %v1056, 6
      %v1065 = vsel %vm705, %v1063, %v1064
      %v1067 = vsel %vm604, %v1055, %v1060
      %v1069 = vrot.slane %v1067, 1
      %v1070 = vrot.slane %v1065, 1
      %1071 = vrot.lane.b32.xlu0 %v1069, 64
      %v1072 = vpop.permute.xlu0 %1071
      %1073 = vrot.lane.b32.xlu0 %v1070, 64
      %v1074 = vpop.permute.xlu0 %1073
      %v1075 = vsel %vm604, %v1072, %v1074
      %v1078 = vrot.slane %v1067, 2
      %v1079 = vrot.slane %v1065, 2
      %v1082 = vsel %vm604, %v1065, %v1072
      %v1083 = vpack.c.bf16 %v1067, %v1067
      %v1084 = vpack.c.bf16 %v1082, %v1082
      %v1085 = vpack.c.bf16 %v1075, %v1075
      %v1086 = vpack.c.bf16 %v1078, %v1078
      %v1087 = vpack.c.bf16 %v1079, %v1079
      %v1088 = vld [vmem:[%s5] sm:$0xf]
      %v1089 = vld [vmem:[%s5 + $0x4] sm:$0xf]
      %v1090 = vld [vmem:[%s5 + $0x8] sm:$0xf]
      %v1091 = vld [vmem:[%s5 + $0xc] sm:$0xf]
      %v1092 = vld [vmem:[%s5 + $0x10] sm:$0xf]
      %v1093 = vld [vmem:[%s5 + $0x14] sm:$0xf]
      %v1094 = vld [vmem:[%s5 + $0x18] sm:$0xf]
      %v1095 = vld [vmem:[%s5 + $0x1c] sm:$0xf]
      %v1096 = vld [vmem:[%s5 + $0x20] sm:$0xf]
      %v1097 = vld [vmem:[%s5 + $0x24] sm:$0xf]
      %v1098 = vld [vmem:[%s5 + $0x28] sm:$0xf]
      %v1099 = vld [vmem:[%s5 + $0x2c] sm:$0xf]
      %v1100 = vld [vmem:[%s5 + $0x30] sm:$0xf]
      %v1101 = vld [vmem:[%s5 + $0x34] sm:$0xf]
      %v1102 = vld [vmem:[%s5 + $0x38] sm:$0xf]
      %v1103 = vld [vmem:[%s5 + $0x3c] sm:$0xf]
      %v1104 = vld [vmem:[%s5 + $0x40] sm:$0xf]
      %v1105 = vld [vmem:[%s5 + $0x44] sm:$0xf]
      %v1106 = vld [vmem:[%s5 + $0x48] sm:$0xf]
      %v1107 = vld [vmem:[%s5 + $0x4c] sm:$0xf]
      %v1108 = vld [vmem:[%s5 + $0x50] sm:$0xf]
      %v1109 = vld [vmem:[%s5 + $0x54] sm:$0xf]
      %v1110 = vld [vmem:[%s5 + $0x58] sm:$0xf]
      %v1111 = vld [vmem:[%s5 + $0x5c] sm:$0xf]
      %v1112 = vld [vmem:[%s5 + $0x60] sm:$0xf]
      %v1113 = vld [vmem:[%s5 + $0x64] sm:$0xf]
      %v1114 = vld [vmem:[%s5 + $0x68] sm:$0xf]
      %v1115 = vld [vmem:[%s5 + $0x6c] sm:$0xf]
      %v1116 = vld [vmem:[%s5 + $0x70] sm:$0xf]
      %v1117 = vld [vmem:[%s5 + $0x74] sm:$0xf]
      %v1118 = vld [vmem:[%s5 + $0x78] sm:$0xf]
      %v1119 = vld [vmem:[%s5 + $0x7c] sm:$0xf]
      %v1120 = vld [vmem:[%s5 + $0x80] sm:$0xf]
      %v1121 = vld [vmem:[%s5 + $0x84] sm:$0xf]
      %v1122 = vld [vmem:[%s5 + $0x88] sm:$0xf]
      %v1123 = vld [vmem:[%s5 + $0x8c] sm:$0xf]
      %v1124 = vld [vmem:[%s5 + $0x90] sm:$0xf]
      %v1125 = vld [vmem:[%s5 + $0x94] sm:$0xf]
      %v1126 = vld [vmem:[%s5 + $0x98] sm:$0xf]
      %v1127 = vld [vmem:[%s5 + $0x9c] sm:$0xf]
      %v1128 = vld [vmem:[%s5 + $0xa0] sm:$0xf]
      %v1129 = vld [vmem:[%s5 + $0xa4] sm:$0xf]
      %v1130 = vld [vmem:[%s5 + $0xa8] sm:$0xf]
      %v1131 = vld [vmem:[%s5 + $0xac] sm:$0xf]
      %v1132 = vld [vmem:[%s5 + $0xb0] sm:$0xf]
      %v1133 = vld [vmem:[%s5 + $0xb4] sm:$0xf]
      %v1134 = vld [vmem:[%s5 + $0xb8] sm:$0xf]
      %v1135 = vld [vmem:[%s5 + $0xbc] sm:$0xf]
      %v1136 = vld [vmem:[%s5 + $0xc0] sm:$0xf]
      %v1137 = vld [vmem:[%s5 + $0xc4] sm:$0xf]
      %v1138 = vld [vmem:[%s5 + $0xc8] sm:$0xf]
      %v1139 = vld [vmem:[%s5 + $0xcc] sm:$0xf]
      %v1140 = vld [vmem:[%s5 + $0xd0] sm:$0xf]
      %v1141 = vld [vmem:[%s5 + $0xd4] sm:$0xf]
      %v1142 = vld [vmem:[%s5 + $0xd8] sm:$0xf]
      %v1143 = vld [vmem:[%s5 + $0xdc] sm:$0xf]
      %v1144 = vld [vmem:[%s5 + $0xe0] sm:$0xf]
      %v1145 = vld [vmem:[%s5 + $0xe4] sm:$0xf]
      %v1146 = vld [vmem:[%s5 + $0xe8] sm:$0xf]
      %v1147 = vld [vmem:[%s5 + $0xec] sm:$0xf]
      %v1148 = vld [vmem:[%s5 + $0xf0] sm:$0xf]
      %v1149 = vld [vmem:[%s5 + $0xf4] sm:$0xf]
      %v1150 = vld [vmem:[%s5 + $0xf8] sm:$0xf]
      %v1151 = vld [vmem:[%s5 + $0xfc] sm:$0xf]
      %v1152 = vld [vmem:[%s5 + $0x100] sm:$0xf]
      %v1153 = vld [vmem:[%s5 + $0x104] sm:$0xf]
      %v1154 = vld [vmem:[%s5 + $0x108] sm:$0xf]
      %v1155 = vld [vmem:[%s5 + $0x10c] sm:$0xf]
      %v1156 = vld [vmem:[%s5 + $0x110] sm:$0xf]
      %v1157 = vld [vmem:[%s5 + $0x114] sm:$0xf]
      %v1158 = vld [vmem:[%s5 + $0x118] sm:$0xf]
      %v1159 = vld [vmem:[%s5 + $0x11c] sm:$0xf]
      %v1160 = vld [vmem:[%s6] sm:$0x1]
      %v1233 = vunpack.c.l.b16 %v1088
      %v1234 = vunpack.c.l.b16 %v1089
      %v1235 = vunpack.c.l.b16 %v1090
      %v1236 = vunpack.c.l.b16 %v1091
      %v1237 = vunpack.c.l.b16 %v1092
      %v1238 = vunpack.c.l.b16 %v1093
      %v1239 = vunpack.c.l.b16 %v1094
      %v1240 = vunpack.c.l.b16 %v1095
      %v1241 = vunpack.c.l.b16 %v1096
      %v1242 = vunpack.c.l.b16 %v1097
      %v1243 = vunpack.c.l.b16 %v1098
      %v1244 = vunpack.c.l.b16 %v1099
      %v1245 = vunpack.c.l.b16 %v1100
      %v1246 = vunpack.c.l.b16 %v1101
      %v1247 = vunpack.c.l.b16 %v1102
      %v1248 = vunpack.c.l.b16 %v1103
      %v1249 = vunpack.c.l.b16 %v1104
      %v1250 = vunpack.c.l.b16 %v1105
      %v1251 = vunpack.c.l.b16 %v1106
      %v1252 = vunpack.c.l.b16 %v1107
      %v1253 = vunpack.c.l.b16 %v1108
      %v1254 = vunpack.c.l.b16 %v1109
      %v1255 = vunpack.c.l.b16 %v1110
      %v1256 = vunpack.c.l.b16 %v1111
      %v1257 = vunpack.c.l.b16 %v1112
      %v1258 = vunpack.c.l.b16 %v1113
      %v1259 = vunpack.c.l.b16 %v1114
      %v1260 = vunpack.c.l.b16 %v1115
      %v1261 = vunpack.c.l.b16 %v1116
      %v1262 = vunpack.c.l.b16 %v1117
      %v1263 = vunpack.c.l.b16 %v1118
      %v1264 = vunpack.c.l.b16 %v1119
      %v1265 = vunpack.c.l.b16 %v1120
      %v1266 = vunpack.c.l.b16 %v1121
      %v1267 = vunpack.c.l.b16 %v1122
      %v1268 = vunpack.c.l.b16 %v1123
      %v1269 = vunpack.c.l.b16 %v1124
      %v1270 = vunpack.c.l.b16 %v1125
      %v1271 = vunpack.c.l.b16 %v1126
      %v1272 = vunpack.c.l.b16 %v1127
      %v1273 = vunpack.c.l.b16 %v1128
      %v1274 = vunpack.c.l.b16 %v1129
      %v1275 = vunpack.c.l.b16 %v1130
      %v1276 = vunpack.c.l.b16 %v1131
      %v1277 = vunpack.c.l.b16 %v1132
      %v1278 = vunpack.c.l.b16 %v1133
      %v1279 = vunpack.c.l.b16 %v1134
      %v1280 = vunpack.c.l.b16 %v1135
      %v1281 = vunpack.c.l.b16 %v1136
      %v1282 = vunpack.c.l.b16 %v1137
      %v1283 = vunpack.c.l.b16 %v1138
      %v1284 = vunpack.c.l.b16 %v1139
      %v1285 = vunpack.c.l.b16 %v1140
      %v1286 = vunpack.c.l.b16 %v1141
      %v1287 = vunpack.c.l.b16 %v1142
      %v1288 = vunpack.c.l.b16 %v1143
      %v1289 = vunpack.c.l.b16 %v1144
      %v1290 = vunpack.c.l.b16 %v1145
      %v1291 = vunpack.c.l.b16 %v1146
      %v1292 = vunpack.c.l.b16 %v1147
      %v1293 = vunpack.c.l.b16 %v1148
      %v1294 = vunpack.c.l.b16 %v1149
      %v1295 = vunpack.c.l.b16 %v1150
      %v1296 = vunpack.c.l.b16 %v1151
      %v1297 = vunpack.c.l.b16 %v1152
      %v1298 = vunpack.c.l.b16 %v1153
      %v1299 = vunpack.c.l.b16 %v1154
      %v1300 = vunpack.c.l.b16 %v1155
      %v1301 = vunpack.c.l.b16 %v1156
      %v1302 = vunpack.c.l.b16 %v1157
      %v1303 = vunpack.c.l.b16 %v1158
      %v1304 = vunpack.c.l.b16 %v1159
      %v1305 = vpack.c.b16 %v1234, %v1233
      %v1306 = vpack.c.b16 %v1236, %v1235
      %v1307 = vpack.c.b16 %v1238, %v1237
      %v1308 = vpack.c.b16 %v1240, %v1239
      %v1309 = vpack.c.b16 %v1242, %v1241
      %v1310 = vpack.c.b16 %v1244, %v1243
      %v1311 = vpack.c.b16 %v1246, %v1245
      %v1312 = vpack.c.b16 %v1248, %v1247
      %v1313 = vpack.c.b16 %v1250, %v1249
      %v1314 = vpack.c.b16 %v1252, %v1251
      %v1315 = vpack.c.b16 %v1254, %v1253
      %v1316 = vpack.c.b16 %v1256, %v1255
      %v1317 = vpack.c.b16 %v1258, %v1257
      %v1318 = vpack.c.b16 %v1260, %v1259
      %v1319 = vpack.c.b16 %v1262, %v1261
      %v1320 = vpack.c.b16 %v1264, %v1263
      %v1321 = vpack.c.b16 %v1266, %v1265
      %v1322 = vpack.c.b16 %v1268, %v1267
      %v1323 = vpack.c.b16 %v1270, %v1269
      %v1324 = vpack.c.b16 %v1272, %v1271
      %v1325 = vpack.c.b16 %v1274, %v1273
      %v1326 = vpack.c.b16 %v1276, %v1275
      %v1327 = vpack.c.b16 %v1278, %v1277
      %v1328 = vpack.c.b16 %v1280, %v1279
      %v1329 = vpack.c.b16 %v1282, %v1281
      %v1330 = vpack.c.b16 %v1284, %v1283
      %v1331 = vpack.c.b16 %v1286, %v1285
      %v1332 = vpack.c.b16 %v1288, %v1287
      %v1333 = vpack.c.b16 %v1290, %v1289
      %v1334 = vpack.c.b16 %v1292, %v1291
      %v1335 = vpack.c.b16 %v1294, %v1293
      %v1336 = vpack.c.b16 %v1296, %v1295
      %v1337 = vpack.c.b16 %v1298, %v1297
      %v1338 = vpack.c.b16 %v1300, %v1299
      %v1339 = vpack.c.b16 %v1302, %v1301
      %v1340 = vpack.c.b16 %v1304, %v1303
      %v1378 = vsel %vm604, %v1087, 0
      %1380 = vmatpush.bf16.msra.mxu0 %v1312
      %1381 = vmatpush.bf16.msra.mxu0 %v1311
      %1382 = vmatpush.bf16.msra.mxu0 %v1310
      %1383 = vmatpush.bf16.msra.mxu0 %v1309
      %1384 = vmatpush.bf16.msra.mxu0 %v1308
      %1385 = vmatpush.bf16.msra.mxu0 %v1307
      %1386 = vmatpush.bf16.msra.mxu0 %v1306
      %1387 = vmatpush.bf16.msra.mxu0 %v1305
      %1388 = vmatmul.bf16.gmra.mxu0 %v1083
      %v1389 = vpop.f32.mrf.mxu0
      %v1390 = vadd.f32 %v1160, %v1389
      %v1391 = vpop.f32.mrf.mxu0
      %1392 = vdwg.mxu0
      %1393 = vmatpush.bf16.msra.mxu0 %v1320
      %1394 = vmatpush.bf16.msra.mxu0 %v1319
      %1395 = vmatpush.bf16.msra.mxu0 %v1318
      %1396 = vmatpush.bf16.msra.mxu0 %v1317
      %1397 = vmatpush.bf16.msra.mxu0 %v1316
      %1398 = vmatpush.bf16.msra.mxu0 %v1315
      %1399 = vmatpush.bf16.msra.mxu0 %v1314
      %1400 = vmatpush.bf16.msra.mxu0 %v1313
      %1401 = vmatmul.bf16.gmra.mxu0 %v1084
      %v1402 = vpop.f32.mrf.mxu0
      %v1403 = vadd.f32 %v1390, %v1402
      %v1404 = vpop.f32.mrf.mxu0
      %1405 = vdwg.mxu0
      %1406 = vmatpush.bf16.msra.mxu0 %v1328
      %1407 = vmatpush.bf16.msra.mxu0 %v1327
      %1408 = vmatpush.bf16.msra.mxu0 %v1326
      %1409 = vmatpush.bf16.msra.mxu0 %v1325
      %1410 = vmatpush.bf16.msra.mxu0 %v1324
      %1411 = vmatpush.bf16.msra.mxu0 %v1323
      %1412 = vmatpush.bf16.msra.mxu0 %v1322
      %1413 = vmatpush.bf16.msra.mxu0 %v1321
      %1414 = vmatmul.bf16.gmra.mxu0 %v1085
      %v1415 = vpop.f32.mrf.mxu0
      %v1416 = vadd.f32 %v1403, %v1415
      %v1417 = vpop.f32.mrf.mxu0
      %1418 = vdwg.mxu0
      %1419 = vmatpush.bf16.msra.mxu0 %v1336
      %1420 = vmatpush.bf16.msra.mxu0 %v1335
      %1421 = vmatpush.bf16.msra.mxu0 %v1334
      %1422 = vmatpush.bf16.msra.mxu0 %v1333
      %1423 = vmatpush.bf16.msra.mxu0 %v1332
      %1424 = vmatpush.bf16.msra.mxu0 %v1331
      %1425 = vmatpush.bf16.msra.mxu0 %v1330
      %1426 = vmatpush.bf16.msra.mxu0 %v1329
      %1427 = vmatmul.bf16.gmra.mxu0 %v1086
      %v1428 = vpop.f32.mrf.mxu0
      %v1429 = vadd.f32 %v1416, %v1428
      %v1430 = vpop.f32.mrf.mxu0
      %1431 = vdwg.mxu0
      %1432 = vmatpush.bf16.msra.mxu0 0
      %1433 = vmatpush.bf16.msra.mxu0 0
      %1434 = vmatpush.bf16.msra.mxu0 0
      %1435 = vmatpush.bf16.msra.mxu0 0
      %1436 = vmatpush.bf16.msra.mxu0 %v1340
      %1437 = vmatpush.bf16.msra.mxu0 %v1339
      %1438 = vmatpush.bf16.msra.mxu0 %v1338
      %1439 = vmatpush.bf16.msra.mxu0 %v1337
      %1440 = vmatmul.bf16.gmra.mxu0 %v1378
      %v1441 = vpop.f32.mrf.mxu0
      %v1442 = vadd.f32 %v1429, %v1441
      %v1443 = vpop.f32.mrf.mxu0
      %1444 = vdwg.mxu0
      %v1445 = vmax.f32 %v1442, 0.0
      %v1446 = vsel %vm700, %v1445, 0.0
      %v1447 = vpack.c.bf16 %v1446, %v1446
      %v1448 = vld [vmem:[%s7] sm:$0xf]
      %v1449 = vld [vmem:[%s7 + $0x4] sm:$0xf]
      %v1450 = vld [vmem:[%s7 + $0x8] sm:$0xf]
      %v1451 = vld [vmem:[%s7 + $0xc] sm:$0xf]
      %v1452 = vld [vmem:[%s7 + $0x10] sm:$0xf]
      %v1453 = vld [vmem:[%s7 + $0x14] sm:$0xf]
      %v1454 = vld [vmem:[%s7 + $0x18] sm:$0xf]
      %v1455 = vld [vmem:[%s7 + $0x1c] sm:$0xf]
      %v1456 = vld [vmem:[%s8] sm:$0x1]
      %v1458 = vperm.slane %v1456, 0
      %v1468 = vunpack.c.l.b16 %v1448
      %v1469 = vunpack.c.l.b16 %v1449
      %v1470 = vunpack.c.l.b16 %v1450
      %v1471 = vunpack.c.l.b16 %v1451
      %v1472 = vunpack.c.l.b16 %v1452
      %v1473 = vunpack.c.l.b16 %v1453
      %v1474 = vunpack.c.l.b16 %v1454
      %v1475 = vunpack.c.l.b16 %v1455
      %v1476 = vpack.c.b16 %v1469, %v1468
      %v1477 = vpack.c.b16 %v1471, %v1470
      %v1478 = vpack.c.b16 %v1473, %v1472
      %v1479 = vpack.c.b16 %v1475, %v1474
      %v1485 = vsel %vm604, %v1447, 0
      %1487 = vmatpush.bf16.msra.mxu0 0
      %1488 = vmatpush.bf16.msra.mxu0 0
      %1489 = vmatpush.bf16.msra.mxu0 0
      %1490 = vmatpush.bf16.msra.mxu0 0
      %1491 = vmatpush.bf16.msra.mxu0 %v1479
      %1492 = vmatpush.bf16.msra.mxu0 %v1478
      %1493 = vmatpush.bf16.msra.mxu0 %v1477
      %1494 = vmatpush.bf16.msra.mxu0 %v1476
      %1495 = vmatmul.bf16.gmra.mxu0 %v1485
      %v1496 = vpop.f32.mrf.mxu0
      %v1497 = vadd.f32 %v1458, %v1496
      %v1498 = vpop.f32.mrf.mxu0
      %1499 = vdwg.mxu0
      %1500 = vst [vmem:[%s330] sm:$0xff] %v1497
      %p1501 = scmp.lt.s32.totalorder %s20, 1
      %s1502 = scalar_select %p1501, %s20, 1
      %s1503 = smul.addr %s1502, 8
      %s1504 = scalar_lea.vmem %s9, %s1503
      // Predicated region
      $region57: #{dqn_forward.1} parent=55 // pred_check
        %p1505 = pneg %p232
      $region58: #{dqn_forward.1} parent=55 // pred_check_branch
        %1507 = sbr.rel (%p1505) target = $region60
      $region59: #{dqn_forward.1} parent=55 // pred_region
        _
      $region60: #{dqn_forward.1} parent=55 // pred_fallthru
        _
    $region56: #{dqn_forward.1} parent=5 // pred_fallthru
      _
    %p1508 = scmp.le.s32.totalorder 2, %s15
    // Predicated region
    $region61: #{dqn_forward.1} parent=5 // pred_check
      %p1509 = pneg %p1508
    $region62: #{dqn_forward.1} parent=5 // pred_check_branch
      %1511 = sbr.rel (%p1509) target = $region64
    $region63: #{dqn_forward.1} parent=5 // pred_region
      %s1512 = ssub.s32 %s15, 2
      // Predicated region
      $region65: #{dqn_forward.1} parent=63 // pred_check
        %p1513 = pneg %p238
      $region66: #{dqn_forward.1} parent=63 // pred_check_branch
        %1515 = sbr.rel (%p1513) target = $region68
      $region67: #{dqn_forward.1} parent=63 // pred_region
        %p1516 = scmp.lt.s32.totalorder %s21, 1
        %s1517 = scalar_select %p1516, %s21, 1
        %s1518 = smul.addr %s1517, 8
        %s1519 = scalar_lea.vmem %s9, %s1518
      $region68: #{dqn_forward.1} parent=63 // pred_fallthru
        _
    $region64: #{dqn_forward.1} parent=5 // pred_fallthru
      _
  $region6: #{dqn_forward.1} parent=0 // loop_footer
    %s19 = sadd.s32 1, %s15
  $region7: #{dqn_forward.1} parent=0 // loop_footer_branch
    %14 = sbr.rel target = $region3
  $region8: #{dqn_forward.1} parent=0 // loop_exit
    _

</llo_original>
